<compile_context>
chip_gen: v5e
topology: v5e:2x2
jax: 0.10.0
libtpu: 0.0.40
codegen_flags: <defaults>
</compile_context>

<pallas_src>
import math

import jax
import jax.numpy as jnp
from jax.experimental import pallas as pl
from jax.experimental.pallas import tpu as pltpu

NUM_LAYERS = 8
TILE_B = 128      # rows per grid step; fills the MXU M dimension
LANE = 128        # lane width; all layer dims padded to a multiple of this


def _round_up(x, m):
    return (x + m - 1) // m * m


def mlp_kernel(x_ref, w_ref, b_ref, o_ref):
    """One batch tile of the full 8-layer MLP.

    x_ref : (TILE_B, P) f32   padded input activations (one batch tile)
    w_ref : (8, P, P)  bf16   zero-padded weight slab, resident across the grid
    b_ref : (8, 1, P)  f32    zero-padded bias slab, resident across the grid
    o_ref : (TILE_B, P) f32   lane-dense padded output tile
    """
    h = x_ref[...]                                           # f32 activations
    for layer in range(NUM_LAYERS - 1):
        y = jnp.dot(h.astype(jnp.bfloat16), w_ref[layer],
                    preferred_element_type=jnp.float32) + b_ref[layer]
        h = jnp.maximum(y, 0.0)                              # ReLU in f32 (VPU)
    y = jnp.dot(h.astype(jnp.bfloat16), w_ref[NUM_LAYERS - 1],
                preferred_element_type=jnp.float32) + b_ref[NUM_LAYERS - 1]
    o_ref[...] = jax.nn.sigmoid(y)                           # sigmoid in f32 (EUP)


def mlp_mlc_lg_forward(x, params):
    """x: [batch, input_size] f32; params: list of (W [in,out] f32, b [1,out] f32)."""
    batch, input_size = x.shape
    out_size = params[-1][0].shape[1]

    # Common lane-dense width for every layer (covers input, hiddens, output).
    P = _round_up(max(max(w.shape) for w, _ in params), LANE)

    # Pack weights into one bf16 slab and biases into one f32 slab.
    w_slab = jnp.stack([
        jnp.pad(w, ((0, P - w.shape[0]), (0, P - w.shape[1])))
        for w, _ in params
    ]).astype(jnp.bfloat16)                                   # (8, P, P)
    b_slab = jnp.stack([
        jnp.pad(b, ((0, 0), (0, P - b.shape[1])))
        for _, b in params
    ]).astype(jnp.float32)                                    # (8, 1, P)

    # Pad the batch to a multiple of TILE_B and the feature dim to P.
    b_pad = _round_up(batch, TILE_B)
    x_pad = jnp.pad(x.astype(jnp.float32),
                    ((0, b_pad - batch), (0, P - input_size)))

    grid = (b_pad // TILE_B,)

    cost = pl.CostEstimate(
        flops=2 * b_pad * NUM_LAYERS * P * P,
        transcendentals=b_pad * P,                            # final sigmoid
        bytes_accessed=(x_pad.size + b_pad * P + b_slab.size) * 4 + w_slab.size * 2,
    )

    out = pl.pallas_call(
        mlp_kernel,
        out_shape=jax.ShapeDtypeStruct((b_pad, P), jnp.float32),
        grid=grid,
        in_specs=[
            pl.BlockSpec((TILE_B, P), lambda i: (i, 0)),             # x tile (pipelined)
            pl.BlockSpec((NUM_LAYERS, P, P), lambda i: (0, 0, 0)),   # weights (resident)
            pl.BlockSpec((NUM_LAYERS, 1, P), lambda i: (0, 0, 0)),   # biases  (resident)
        ],
        out_specs=pl.BlockSpec((TILE_B, P), lambda i: (i, 0)),
        compiler_params=pltpu.CompilerParams(
            dimension_semantics=("parallel",),                # megacore on v7x
        ),
        cost_estimate=cost,
    )(x_pad, w_slab, b_slab)

    return out[:batch, :out_size]


def init_params(key, input_size, hidden_size, output_size):
    """Xavier-uniform weights, zero biases (matches the module's init_weights)."""
    dims = [
        (input_size, hidden_size * 4),
        (hidden_size * 4, hidden_size * 2),
        (hidden_size * 2, hidden_size * 2),
        (hidden_size * 2, hidden_size * 2),
        (hidden_size * 2, hidden_size),
        (hidden_size, hidden_size),
        (hidden_size, hidden_size // 2),
        (hidden_size // 2, output_size),
    ]
    params = []
    for i, (fan_in, fan_out) in enumerate(dims):
        k = jax.random.fold_in(key, i)
        bound = math.sqrt(6.0 / (fan_in + fan_out))
        w = jax.random.uniform(k, (fan_in, fan_out), jnp.float32, -bound, bound)
        b = jnp.zeros((1, fan_out), jnp.float32)
        params.append((w, b))
    return params


def reference_forward(x, params):
    h = x
    for i, (w, b) in enumerate(params):
        h = h @ w + b
        if i < len(params) - 1:
            h = jnp.maximum(h, 0.0)
        else:
            h = jax.nn.sigmoid(h)
    return h


if __name__ == "__main__":
    input_size, hidden_size, output_size = 16, 32, 4
    batch = 8

    key = jax.random.PRNGKey(0)
    params = init_params(jax.random.fold_in(key, 100), input_size, hidden_size, output_size)
    x = jax.random.normal(jax.random.fold_in(key, 200), (batch, input_size), jnp.float32)

    out = mlp_mlc_lg_forward(x, params)
    out = jax.block_until_ready(out)

    ref = reference_forward(x, params)
    assert out.shape == (batch, output_size)
    # bf16 MXU operands -> relaxed tolerance vs. the pure-f32 reference.
    assert jnp.allclose(out, ref, atol=2e-2, rtol=2e-2), "mismatch vs pure-JAX reference"

    print("KERNEL_OK")
</pallas_src>

<mosaic_0001>
module attributes {stable_mosaic.version = 11 : i64} {
  func.func @mlp_kernel(%arg0: i32, %arg1: memref<128x128xf32, #tpu.memory_space<vmem>>, %arg2: memref<8x128x128xbf16, #tpu.memory_space<vmem>>, %arg3: memref<8x1x128xf32, #tpu.memory_space<vmem>>, %arg4: memref<128x128xf32, #tpu.memory_space<vmem>>) attributes {dimension_semantics = [#tpu.dimension_semantics<parallel>], iteration_bounds = array<i64: 1>, scalar_prefetch = 0 : i64, scratch_operands = 0 : i64, tpu.core_type = #tpu.core_type<tc>, window_params = [{transform_indices = @transform_0, window_bounds = array<i64: 128, 128>}, {pipeline_mode = #tpu.pipeline_mode<synchronous>, transform_indices = @transform_1, window_bounds = array<i64: 8, 128, 128>}, {pipeline_mode = #tpu.pipeline_mode<synchronous>, transform_indices = @transform_2, window_bounds = array<i64: 8, 1, 128>}, {transform_indices = @transform_3, window_bounds = array<i64: 128, 128>}]} {
    %c0 = arith.constant 0 : index
    %c0_0 = arith.constant 0 : index
    %0 = vector.load %arg1[%c0, %c0_0] : memref<128x128xf32, #tpu.memory_space<vmem>>, vector<128x128xf32>
    %1 = arith.truncf %0 : vector<128x128xf32> to vector<128x128xbf16>
    %c0_1 = arith.constant 0 : index
    %c0_2 = arith.constant 0 : index
    %c0_3 = arith.constant 0 : index
    %2 = vector.load %arg2[%c0_1, %c0_2, %c0_3] : memref<8x128x128xbf16, #tpu.memory_space<vmem>>, vector<1x128x128xbf16>
    %3 = vector.shape_cast %2 : vector<1x128x128xbf16> to vector<128x128xbf16>
    %cst = arith.constant dense<0.000000e+00> : vector<128x128xf32>
    %4 = tpu.matmul %1, %3, %cst {dimension_numbers = #tpu.dot_dimension_numbers<[1], [0], [0], [1], [0, 0, 1, 1], [], []>} : vector<128x128xbf16>, vector<128x128xbf16>, vector<128x128xf32> -> vector<128x128xf32>
    %c0_4 = arith.constant 0 : index
    %c0_5 = arith.constant 0 : index
    %c0_6 = arith.constant 0 : index
    %5 = vector.load %arg3[%c0_4, %c0_5, %c0_6] : memref<8x1x128xf32, #tpu.memory_space<vmem>>, vector<1x1x128xf32>
    %6 = vector.shape_cast %5 : vector<1x1x128xf32> to vector<1x128xf32>
    %7 = vector.broadcast %6 : vector<1x128xf32> to vector<128x128xf32>
    %8 = arith.addf %4, %7 : vector<128x128xf32>
    %cst_7 = arith.constant 0.000000e+00 : f32
    %9 = vector.broadcast %cst_7 : f32 to vector<128x128xf32>
    %10 = arith.maximumf %8, %9 : vector<128x128xf32>
    %11 = arith.truncf %10 : vector<128x128xf32> to vector<128x128xbf16>
    %c1 = arith.constant 1 : index
    %c0_8 = arith.constant 0 : index
    %c0_9 = arith.constant 0 : index
    %12 = vector.load %arg2[%c1, %c0_8, %c0_9] : memref<8x128x128xbf16, #tpu.memory_space<vmem>>, vector<1x128x128xbf16>
    %13 = vector.shape_cast %12 : vector<1x128x128xbf16> to vector<128x128xbf16>
    %cst_10 = arith.constant dense<0.000000e+00> : vector<128x128xf32>
    %14 = tpu.matmul %11, %13, %cst_10 {dimension_numbers = #tpu.dot_dimension_numbers<[1], [0], [0], [1], [0, 0, 1, 1], [], []>} : vector<128x128xbf16>, vector<128x128xbf16>, vector<128x128xf32> -> vector<128x128xf32>
    %c1_11 = arith.constant 1 : index
    %c0_12 = arith.constant 0 : index
    %c0_13 = arith.constant 0 : index
    %15 = vector.load %arg3[%c1_11, %c0_12, %c0_13] : memref<8x1x128xf32, #tpu.memory_space<vmem>>, vector<1x1x128xf32>
    %16 = vector.shape_cast %15 : vector<1x1x128xf32> to vector<1x128xf32>
    %17 = vector.broadcast %16 : vector<1x128xf32> to vector<128x128xf32>
    %18 = arith.addf %14, %17 : vector<128x128xf32>
    %cst_14 = arith.constant 0.000000e+00 : f32
    %19 = vector.broadcast %cst_14 : f32 to vector<128x128xf32>
    %20 = arith.maximumf %18, %19 : vector<128x128xf32>
    %21 = arith.truncf %20 : vector<128x128xf32> to vector<128x128xbf16>
    %c2 = arith.constant 2 : index
    %c0_15 = arith.constant 0 : index
    %c0_16 = arith.constant 0 : index
    %22 = vector.load %arg2[%c2, %c0_15, %c0_16] : memref<8x128x128xbf16, #tpu.memory_space<vmem>>, vector<1x128x128xbf16>
    %23 = vector.shape_cast %22 : vector<1x128x128xbf16> to vector<128x128xbf16>
    %cst_17 = arith.constant dense<0.000000e+00> : vector<128x128xf32>
    %24 = tpu.matmul %21, %23, %cst_17 {dimension_numbers = #tpu.dot_dimension_numbers<[1], [0], [0], [1], [0, 0, 1, 1], [], []>} : vector<128x128xbf16>, vector<128x128xbf16>, vector<128x128xf32> -> vector<128x128xf32>
    %c2_18 = arith.constant 2 : index
    %c0_19 = arith.constant 0 : index
    %c0_20 = arith.constant 0 : index
    %25 = vector.load %arg3[%c2_18, %c0_19, %c0_20] : memref<8x1x128xf32, #tpu.memory_space<vmem>>, vector<1x1x128xf32>
    %26 = vector.shape_cast %25 : vector<1x1x128xf32> to vector<1x128xf32>
    %27 = vector.broadcast %26 : vector<1x128xf32> to vector<128x128xf32>
    %28 = arith.addf %24, %27 : vector<128x128xf32>
    %cst_21 = arith.constant 0.000000e+00 : f32
    %29 = vector.broadcast %cst_21 : f32 to vector<128x128xf32>
    %30 = arith.maximumf %28, %29 : vector<128x128xf32>
    %31 = arith.truncf %30 : vector<128x128xf32> to vector<128x128xbf16>
    %c3 = arith.constant 3 : index
    %c0_22 = arith.constant 0 : index
    %c0_23 = arith.constant 0 : index
    %32 = vector.load %arg2[%c3, %c0_22, %c0_23] : memref<8x128x128xbf16, #tpu.memory_space<vmem>>, vector<1x128x128xbf16>
    %33 = vector.shape_cast %32 : vector<1x128x128xbf16> to vector<128x128xbf16>
    %cst_24 = arith.constant dense<0.000000e+00> : vector<128x128xf32>
    %34 = tpu.matmul %31, %33, %cst_24 {dimension_numbers = #tpu.dot_dimension_numbers<[1], [0], [0], [1], [0, 0, 1, 1], [], []>} : vector<128x128xbf16>, vector<128x128xbf16>, vector<128x128xf32> -> vector<128x128xf32>
    %c3_25 = arith.constant 3 : index
    %c0_26 = arith.constant 0 : index
    %c0_27 = arith.constant 0 : index
    %35 = vector.load %arg3[%c3_25, %c0_26, %c0_27] : memref<8x1x128xf32, #tpu.memory_space<vmem>>, vector<1x1x128xf32>
    %36 = vector.shape_cast %35 : vector<1x1x128xf32> to vector<1x128xf32>
    %37 = vector.broadcast %36 : vector<1x128xf32> to vector<128x128xf32>
    %38 = arith.addf %34, %37 : vector<128x128xf32>
    %cst_28 = arith.constant 0.000000e+00 : f32
    %39 = vector.broadcast %cst_28 : f32 to vector<128x128xf32>
    %40 = arith.maximumf %38, %39 : vector<128x128xf32>
    %41 = arith.truncf %40 : vector<128x128xf32> to vector<128x128xbf16>
    %c4 = arith.constant 4 : index
    %c0_29 = arith.constant 0 : index
    %c0_30 = arith.constant 0 : index
    %42 = vector.load %arg2[%c4, %c0_29, %c0_30] : memref<8x128x128xbf16, #tpu.memory_space<vmem>>, vector<1x128x128xbf16>
    %43 = vector.shape_cast %42 : vector<1x128x128xbf16> to vector<128x128xbf16>
    %cst_31 = arith.constant dense<0.000000e+00> : vector<128x128xf32>
    %44 = tpu.matmul %41, %43, %cst_31 {dimension_numbers = #tpu.dot_dimension_numbers<[1], [0], [0], [1], [0, 0, 1, 1], [], []>} : vector<128x128xbf16>, vector<128x128xbf16>, vector<128x128xf32> -> vector<128x128xf32>
    %c4_32 = arith.constant 4 : index
    %c0_33 = arith.constant 0 : index
    %c0_34 = arith.constant 0 : index
    %45 = vector.load %arg3[%c4_32, %c0_33, %c0_34] : memref<8x1x128xf32, #tpu.memory_space<vmem>>, vector<1x1x128xf32>
    %46 = vector.shape_cast %45 : vector<1x1x128xf32> to vector<1x128xf32>
    %47 = vector.broadcast %46 : vector<1x128xf32> to vector<128x128xf32>
    %48 = arith.addf %44, %47 : vector<128x128xf32>
    %cst_35 = arith.constant 0.000000e+00 : f32
    %49 = vector.broadcast %cst_35 : f32 to vector<128x128xf32>
    %50 = arith.maximumf %48, %49 : vector<128x128xf32>
    %51 = arith.truncf %50 : vector<128x128xf32> to vector<128x128xbf16>
    %c5 = arith.constant 5 : index
    %c0_36 = arith.constant 0 : index
    %c0_37 = arith.constant 0 : index
    %52 = vector.load %arg2[%c5, %c0_36, %c0_37] : memref<8x128x128xbf16, #tpu.memory_space<vmem>>, vector<1x128x128xbf16>
    %53 = vector.shape_cast %52 : vector<1x128x128xbf16> to vector<128x128xbf16>
    %cst_38 = arith.constant dense<0.000000e+00> : vector<128x128xf32>
    %54 = tpu.matmul %51, %53, %cst_38 {dimension_numbers = #tpu.dot_dimension_numbers<[1], [0], [0], [1], [0, 0, 1, 1], [], []>} : vector<128x128xbf16>, vector<128x128xbf16>, vector<128x128xf32> -> vector<128x128xf32>
    %c5_39 = arith.constant 5 : index
    %c0_40 = arith.constant 0 : index
    %c0_41 = arith.constant 0 : index
    %55 = vector.load %arg3[%c5_39, %c0_40, %c0_41] : memref<8x1x128xf32, #tpu.memory_space<vmem>>, vector<1x1x128xf32>
    %56 = vector.shape_cast %55 : vector<1x1x128xf32> to vector<1x128xf32>
    %57 = vector.broadcast %56 : vector<1x128xf32> to vector<128x128xf32>
    %58 = arith.addf %54, %57 : vector<128x128xf32>
    %cst_42 = arith.constant 0.000000e+00 : f32
    %59 = vector.broadcast %cst_42 : f32 to vector<128x128xf32>
    %60 = arith.maximumf %58, %59 : vector<128x128xf32>
    %61 = arith.truncf %60 : vector<128x128xf32> to vector<128x128xbf16>
    %c6 = arith.constant 6 : index
    %c0_43 = arith.constant 0 : index
    %c0_44 = arith.constant 0 : index
    %62 = vector.load %arg2[%c6, %c0_43, %c0_44] : memref<8x128x128xbf16, #tpu.memory_space<vmem>>, vector<1x128x128xbf16>
    %63 = vector.shape_cast %62 : vector<1x128x128xbf16> to vector<128x128xbf16>
    %cst_45 = arith.constant dense<0.000000e+00> : vector<128x128xf32>
    %64 = tpu.matmul %61, %63, %cst_45 {dimension_numbers = #tpu.dot_dimension_numbers<[1], [0], [0], [1], [0, 0, 1, 1], [], []>} : vector<128x128xbf16>, vector<128x128xbf16>, vector<128x128xf32> -> vector<128x128xf32>
    %c6_46 = arith.constant 6 : index
    %c0_47 = arith.constant 0 : index
    %c0_48 = arith.constant 0 : index
    %65 = vector.load %arg3[%c6_46, %c0_47, %c0_48] : memref<8x1x128xf32, #tpu.memory_space<vmem>>, vector<1x1x128xf32>
    %66 = vector.shape_cast %65 : vector<1x1x128xf32> to vector<1x128xf32>
    %67 = vector.broadcast %66 : vector<1x128xf32> to vector<128x128xf32>
    %68 = arith.addf %64, %67 : vector<128x128xf32>
    %cst_49 = arith.constant 0.000000e+00 : f32
    %69 = vector.broadcast %cst_49 : f32 to vector<128x128xf32>
    %70 = arith.maximumf %68, %69 : vector<128x128xf32>
    %71 = arith.truncf %70 : vector<128x128xf32> to vector<128x128xbf16>
    %c7 = arith.constant 7 : index
    %c0_50 = arith.constant 0 : index
    %c0_51 = arith.constant 0 : index
    %72 = vector.load %arg2[%c7, %c0_50, %c0_51] : memref<8x128x128xbf16, #tpu.memory_space<vmem>>, vector<1x128x128xbf16>
    %73 = vector.shape_cast %72 : vector<1x128x128xbf16> to vector<128x128xbf16>
    %cst_52 = arith.constant dense<0.000000e+00> : vector<128x128xf32>
    %74 = tpu.matmul %71, %73, %cst_52 {dimension_numbers = #tpu.dot_dimension_numbers<[1], [0], [0], [1], [0, 0, 1, 1], [], []>} : vector<128x128xbf16>, vector<128x128xbf16>, vector<128x128xf32> -> vector<128x128xf32>
    %c7_53 = arith.constant 7 : index
    %c0_54 = arith.constant 0 : index
    %c0_55 = arith.constant 0 : index
    %75 = vector.load %arg3[%c7_53, %c0_54, %c0_55] : memref<8x1x128xf32, #tpu.memory_space<vmem>>, vector<1x1x128xf32>
    %76 = vector.shape_cast %75 : vector<1x1x128xf32> to vector<1x128xf32>
    %77 = vector.broadcast %76 : vector<1x128xf32> to vector<128x128xf32>
    %78 = arith.addf %74, %77 : vector<128x128xf32>
    %79 = arith.negf %78 : vector<128x128xf32>
    %80 = math.exp %79 : vector<128x128xf32>
    %cst_56 = arith.constant 1.000000e+00 : f32
    %81 = vector.broadcast %cst_56 : f32 to vector<128x128xf32>
    %82 = arith.addf %81, %80 : vector<128x128xf32>
    %83 = arith.divf %81, %82 : vector<128x128xf32>
    %c0_57 = arith.constant 0 : index
    %c0_58 = arith.constant 0 : index
    %84 = vector.load %arg4[%c0_57, %c0_58] : memref<128x128xf32, #tpu.memory_space<vmem>>, vector<128x128xf32>
    tpu.vector_store %arg4[%c0_57, %c0_58], %83 {strides = array<i32>} : memref<128x128xf32, #tpu.memory_space<vmem>>, vector<128x128xf32>,
    return
  }
  func.func @transform_0(%arg0: i32) -> (i32, i32) {
    %c0_i32 = arith.constant 0 : i32
    %c0_i32_0 = arith.constant 0 : i32
    return %arg0, %c0_i32 : i32, i32
  }
  func.func @transform_1(%arg0: i32) -> (i32, i32, i32) {
    %c0_i32 = arith.constant 0 : i32
    %c0_i32_0 = arith.constant 0 : i32
    %c0_i32_1 = arith.constant 0 : i32
    %c0_i32_2 = arith.constant 0 : i32
    return %c0_i32, %c0_i32_0, %c0_i32_1 : i32, i32, i32
  }
  func.func @transform_2(%arg0: i32) -> (i32, i32, i32) {
    %c0_i32 = arith.constant 0 : i32
    %c0_i32_0 = arith.constant 0 : i32
    %c0_i32_1 = arith.constant 0 : i32
    %c0_i32_2 = arith.constant 0 : i32
    return %c0_i32, %c0_i32_0, %c0_i32_1 : i32, i32, i32
  }
  func.func @transform_3(%arg0: i32) -> (i32, i32) {
    %c0_i32 = arith.constant 0 : i32
    %c0_i32_0 = arith.constant 0 : i32
    return %arg0, %c0_i32 : i32, i32
  }
}

</mosaic_0001>

<llo_original>
// kernel: tpu_custom_call.1
$region0: #{tpu_custom_call.1}
  #allocation0 [shape = 'u32[]', space=smem, size = 0x4, offset = 0x4, fixed_abs, tag = 'smem constant byte address 0x4 - core index']
  #allocation1 [shape = 'u32[72,128]{1,0:T(1,128)}', space=vmem, size = 0x9000, scoped, tag = 'internal scratch']
  %s0 = inlined_call_operand.hbm [shape: f32[128,128], index: 0, kind: input, shape index: {}]
  %s1 = inlined_call_operand.hbm [shape: bf16[8,128,128], index: 1, kind: input, shape index: {}]
  %s2 = inlined_call_operand.hbm [shape: f32[8,1,128], index: 2, kind: input, shape index: {}]
  %s3 = inlined_call_operand.hbm [shape: f32[128,128], index: 3, kind: output, shape index: {}]
  %s4 = sld [smem:[#allocation0]]
  $region34: #{tpu_custom_call.1} parent=0
    _
  %s6 = ssub.s32 1, %s4
  %s7 = scalar_select 0, %s6, %s4
  $region1: #{tpu_custom_call.1} parent=0
    #allocation2 [shape = 'u8[65536]{0}', space=vmem, size = 0x10000, scoped, tag = 'input window, operand 0, single buffered']
    #allocation3 [shape = 's32[1]{0}', space=sflag, size = 0x4, scoped, tag = 'scoped memory for tpu_custom_call.1']
    #allocation4 [shape = 's32[1]{0}', space=sflag, size = 0x4, scoped, tag = 'scoped memory for tpu_custom_call.1']
    #allocation5 [shape = 'u8[262144]{0}', space=vmem, size = 0x40000, scoped, tag = 'input window, operand 1, single buffered']
    #allocation6 [shape = 's32[1]{0}', space=sflag, size = 0x4, scoped, tag = 'scoped memory for tpu_custom_call.1']
    #allocation7 [shape = 'u8[4096]{0}', space=vmem, size = 0x1000, scoped, tag = 'input window, operand 2, single buffered']
    #allocation8 [shape = 'u8[65536]{0}', space=vmem, size = 0x10000, scoped, tag = 'output window, operand 0, single buffered']
    %8 = vsyncpa [#allocation3], 0
    %9 = vsyncpa [#allocation6], 0
    %10 = vsyncpa [#allocation4], 0
    // Predicated region
    $region2: #{tpu_custom_call.1} parent=1 // pred_check
      _
    $region3: #{tpu_custom_call.1} parent=1 // pred_check_branch
      %12 = sbr.rel (0) target = $region5
    $region4: #{tpu_custom_call.1} parent=1 // pred_region
      %14 = vsyncadd [#allocation3], 0
      %s15 = sshll.u32 %s0, 4
      %s16 = int_to_ptr.hbm [resolvable:$true] %s15
      %s17 = sshll.u32 [#allocation2], 4
      %s18 = int_to_ptr.vmem [resolvable:$true] %s17
      %23 = dma.hbm_to_vmem [thread:$0]  %s16, 2048, %s18, [#allocation3], 128, 128, 8
    $region5: #{tpu_custom_call.1} parent=1 // pred_fallthru
      _
    // Predicated region
    $region6: #{tpu_custom_call.1} parent=1 // pred_check
      _
    $region7: #{tpu_custom_call.1} parent=1 // pred_check_branch
      %25 = sbr.rel (0) target = $region9
    $region8: #{tpu_custom_call.1} parent=1 // pred_region
      %27 = vsyncadd [#allocation6], 0
      %s28 = sshll.u32 %s1, 4
      %s29 = int_to_ptr.hbm [resolvable:$true] %s28
      %s30 = sshll.u32 [#allocation5], 4
      %s31 = int_to_ptr.vmem [resolvable:$true] %s30
      %36 = dma.hbm_to_vmem [thread:$0]  %s29, 8192, %s31, [#allocation6], 64, 64, 4
    $region9: #{tpu_custom_call.1} parent=1 // pred_fallthru
      _
    // Predicated region
    $region10: #{tpu_custom_call.1} parent=1 // pred_check
      _
    $region11: #{tpu_custom_call.1} parent=1 // pred_check_branch
      %38 = sbr.rel (0) target = $region13
    $region12: #{tpu_custom_call.1} parent=1 // pred_region
      %40 = vsyncadd [#allocation6], 0
      %s41 = sshll.u32 %s2, 4
      %s42 = int_to_ptr.hbm [resolvable:$true] %s41
      %s43 = sshll.u32 [#allocation7], 4
      %s44 = int_to_ptr.vmem [resolvable:$true] %s43
      %49 = dma.hbm_to_vmem [thread:$0]  %s42, 128, %s44, [#allocation6], 16, 16, 1
    $region13: #{tpu_custom_call.1} parent=1 // pred_fallthru
      _
    // Predicated region
    $region14: #{tpu_custom_call.1} parent=1 // pred_check
      _
    $region15: #{tpu_custom_call.1} parent=1 // pred_check_branch
      %51 = sbr.rel (0) target = $region17
    $region16: #{tpu_custom_call.1} parent=1 // pred_region
      %53 = dma.done [#allocation3], 2048
    $region17: #{tpu_custom_call.1} parent=1 // pred_fallthru
      _
    // Predicated region
    $region18: #{tpu_custom_call.1} parent=1 // pred_check
      _
    $region19: #{tpu_custom_call.1} parent=1 // pred_check_branch
      %55 = sbr.rel (0) target = $region21
    $region20: #{tpu_custom_call.1} parent=1 // pred_region
      %57 = dma.done [#allocation6], 8192
    $region21: #{tpu_custom_call.1} parent=1 // pred_fallthru
      _
    // Predicated region
    $region22: #{tpu_custom_call.1} parent=1 // pred_check
      _
    $region23: #{tpu_custom_call.1} parent=1 // pred_check_branch
      %59 = sbr.rel (0) target = $region25
    $region24: #{tpu_custom_call.1} parent=1 // pred_region
      %61 = dma.done [#allocation6], 128
    $region25: #{tpu_custom_call.1} parent=1 // pred_fallthru
      _
    %v62 = vld [vmem:[#allocation2] sm:$0xff]
    %v63 = vld [vmem:[#allocation2 + $0x8] sm:$0xff]
    %v64 = vld [vmem:[#allocation2 + $0x10] sm:$0xff]
    %v65 = vld [vmem:[#allocation2 + $0x18] sm:$0xff]
    %v66 = vld [vmem:[#allocation2 + $0x20] sm:$0xff]
    %v67 = vld [vmem:[#allocation2 + $0x28] sm:$0xff]
    %v68 = vld [vmem:[#allocation2 + $0x30] sm:$0xff]
    %v69 = vld [vmem:[#allocation2 + $0x38] sm:$0xff]
    %v70 = vld [vmem:[#allocation2 + $0x40] sm:$0xff]
    %v71 = vld [vmem:[#allocation2 + $0x48] sm:$0xff]
    %v72 = vld [vmem:[#allocation2 + $0x50] sm:$0xff]
    %v73 = vld [vmem:[#allocation2 + $0x58] sm:$0xff]
    %v74 = vld [vmem:[#allocation2 + $0x60] sm:$0xff]
    %v75 = vld [vmem:[#allocation2 + $0x68] sm:$0xff]
    %v76 = vld [vmem:[#allocation2 + $0x70] sm:$0xff]
    %v77 = vld [vmem:[#allocation2 + $0x78] sm:$0xff]
    %v78 = vpack.c.bf16 %v63, %v62
    %v79 = vpack.c.bf16 %v65, %v64
    %v80 = vpack.c.bf16 %v67, %v66
    %v81 = vpack.c.bf16 %v69, %v68
    %v82 = vpack.c.bf16 %v71, %v70
    %v83 = vpack.c.bf16 %v73, %v72
    %v84 = vpack.c.bf16 %v75, %v74
    %v85 = vpack.c.bf16 %v77, %v76
    %v86 = vld [vmem:[#allocation5] sm:$0xf]
    %v87 = vld [vmem:[#allocation5 + $0x4] sm:$0xf]
    %v88 = vld [vmem:[#allocation5 + $0x8] sm:$0xf]
    %v89 = vld [vmem:[#allocation5 + $0xc] sm:$0xf]
    %v90 = vld [vmem:[#allocation5 + $0x10] sm:$0xf]
    %v91 = vld [vmem:[#allocation5 + $0x14] sm:$0xf]
    %v92 = vld [vmem:[#allocation5 + $0x18] sm:$0xf]
    %v93 = vld [vmem:[#allocation5 + $0x1c] sm:$0xf]
    %v94 = vld [vmem:[#allocation5 + $0x20] sm:$0xf]
    %v95 = vld [vmem:[#allocation5 + $0x24] sm:$0xf]
    %v96 = vld [vmem:[#allocation5 + $0x28] sm:$0xf]
    %v97 = vld [vmem:[#allocation5 + $0x2c] sm:$0xf]
    %v98 = vld [vmem:[#allocation5 + $0x30] sm:$0xf]
    %v99 = vld [vmem:[#allocation5 + $0x34] sm:$0xf]
    %v100 = vld [vmem:[#allocation5 + $0x38] sm:$0xf]
    %v101 = vld [vmem:[#allocation5 + $0x3c] sm:$0xf]
    %v102 = vld [vmem:[#allocation7] sm:$0x1]
    %v104 = vperm.slane %v102, 0
    %v122 = vunpack.c.l.b16 %v86
    %v123 = vunpack.c.l.b16 %v87
    %v124 = vunpack.c.l.b16 %v88
    %v125 = vunpack.c.l.b16 %v89
    %v126 = vunpack.c.l.b16 %v90
    %v127 = vunpack.c.l.b16 %v91
    %v128 = vunpack.c.l.b16 %v92
    %v129 = vunpack.c.l.b16 %v93
    %v130 = vunpack.c.l.b16 %v94
    %v131 = vunpack.c.l.b16 %v95
    %v132 = vunpack.c.l.b16 %v96
    %v133 = vunpack.c.l.b16 %v97
    %v134 = vunpack.c.l.b16 %v98
    %v135 = vunpack.c.l.b16 %v99
    %v136 = vunpack.c.l.b16 %v100
    %v137 = vunpack.c.l.b16 %v101
    %v138 = vpack.c.b16 %v123, %v122
    %v139 = vpack.c.b16 %v125, %v124
    %v140 = vpack.c.b16 %v127, %v126
    %v141 = vpack.c.b16 %v129, %v128
    %v142 = vpack.c.b16 %v131, %v130
    %v143 = vpack.c.b16 %v133, %v132
    %v144 = vpack.c.b16 %v135, %v134
    %v145 = vpack.c.b16 %v137, %v136
    %154 = vmatpush.bf16.msra.mxu0 %v145
    %155 = vmatpush.bf16.msra.mxu0 %v144
    %156 = vmatpush.bf16.msra.mxu0 %v143
    %157 = vmatpush.bf16.msra.mxu0 %v142
    %158 = vmatpush.bf16.msra.mxu0 %v141
    %159 = vmatpush.bf16.msra.mxu0 %v140
    %160 = vmatpush.bf16.msra.mxu0 %v139
    %161 = vmatpush.bf16.msra.mxu0 %v138
    %162 = vmatmul.bf16.gmra.mxu0 %v78
    %v163 = vpop.f32.mrf.mxu0
    %v164 = vadd.f32 %v104, %v163
    %v165 = vpop.f32.mrf.mxu0
    %v166 = vadd.f32 %v104, %v165
    %167 = vmatmul.bf16.gmra.mxu0 %v79
    %v168 = vpop.f32.mrf.mxu0
    %v169 = vadd.f32 %v104, %v168
    %v170 = vpop.f32.mrf.mxu0
    %v171 = vadd.f32 %v104, %v170
    %172 = vmatmul.bf16.gmra.mxu0 %v80
    %v173 = vpop.f32.mrf.mxu0
    %v174 = vadd.f32 %v104, %v173
    %v175 = vpop.f32.mrf.mxu0
    %v176 = vadd.f32 %v104, %v175
    %177 = vmatmul.bf16.gmra.mxu0 %v81
    %v178 = vpop.f32.mrf.mxu0
    %v179 = vadd.f32 %v104, %v178
    %v180 = vpop.f32.mrf.mxu0
    %v181 = vadd.f32 %v104, %v180
    %182 = vmatmul.bf16.gmra.mxu0 %v82
    %v183 = vpop.f32.mrf.mxu0
    %v184 = vadd.f32 %v104, %v183
    %v185 = vpop.f32.mrf.mxu0
    %v186 = vadd.f32 %v104, %v185
    %187 = vmatmul.bf16.gmra.mxu0 %v83
    %v188 = vpop.f32.mrf.mxu0
    %v189 = vadd.f32 %v104, %v188
    %v190 = vpop.f32.mrf.mxu0
    %v191 = vadd.f32 %v104, %v190
    %192 = vmatmul.bf16.gmra.mxu0 %v84
    %v193 = vpop.f32.mrf.mxu0
    %v194 = vadd.f32 %v104, %v193
    %v195 = vpop.f32.mrf.mxu0
    %v196 = vadd.f32 %v104, %v195
    %197 = vmatmul.bf16.gmra.mxu0 %v85
    %v198 = vpop.f32.mrf.mxu0
    %v199 = vadd.f32 %v104, %v198
    %v200 = vpop.f32.mrf.mxu0
    %v201 = vadd.f32 %v104, %v200
    %202 = vdwg.mxu0
    %v203 = vmax.f32 %v164, 0.0
    %v204 = vmax.f32 %v166, 0.0
    %v205 = vmax.f32 %v169, 0.0
    %v206 = vmax.f32 %v171, 0.0
    %v207 = vmax.f32 %v174, 0.0
    %v208 = vmax.f32 %v176, 0.0
    %v209 = vmax.f32 %v179, 0.0
    %v210 = vmax.f32 %v181, 0.0
    %v211 = vmax.f32 %v184, 0.0
    %v212 = vmax.f32 %v186, 0.0
    %v213 = vmax.f32 %v189, 0.0
    %v214 = vmax.f32 %v191, 0.0
    %v215 = vmax.f32 %v194, 0.0
    %v216 = vmax.f32 %v196, 0.0
    %v217 = vmax.f32 %v199, 0.0
    %v218 = vmax.f32 %v201, 0.0
    %v219 = vpack.c.bf16 %v204, %v203
    %v220 = vpack.c.bf16 %v206, %v205
    %v221 = vpack.c.bf16 %v208, %v207
    %v222 = vpack.c.bf16 %v210, %v209
    %v223 = vpack.c.bf16 %v212, %v211
    %v224 = vpack.c.bf16 %v214, %v213
    %v225 = vpack.c.bf16 %v216, %v215
    %v226 = vpack.c.bf16 %v218, %v217
    %s227 = scalar_lea.vmem [#allocation5], 64
    %v228 = vld [vmem:[%s227] sm:$0xf]
    %v229 = vld [vmem:[%s227 + $0x4] sm:$0xf]
    %v230 = vld [vmem:[%s227 + $0x8] sm:$0xf]
    %v231 = vld [vmem:[%s227 + $0xc] sm:$0xf]
    %v232 = vld [vmem:[%s227 + $0x10] sm:$0xf]
    %v233 = vld [vmem:[%s227 + $0x14] sm:$0xf]
    %v234 = vld [vmem:[%s227 + $0x18] sm:$0xf]
    %v235 = vld [vmem:[%s227 + $0x1c] sm:$0xf]
    %v236 = vld [vmem:[%s227 + $0x20] sm:$0xf]
    %v237 = vld [vmem:[%s227 + $0x24] sm:$0xf]
    %v238 = vld [vmem:[%s227 + $0x28] sm:$0xf]
    %v239 = vld [vmem:[%s227 + $0x2c] sm:$0xf]
    %v240 = vld [vmem:[%s227 + $0x30] sm:$0xf]
    %v241 = vld [vmem:[%s227 + $0x34] sm:$0xf]
    %v242 = vld [vmem:[%s227 + $0x38] sm:$0xf]
    %v243 = vld [vmem:[%s227 + $0x3c] sm:$0xf]
    %s244 = scalar_lea.vmem [#allocation7], 1
    %v245 = vld [vmem:[%s244] sm:$0x1]
    %v247 = vperm.slane %v245, 0
    %v265 = vunpack.c.l.b16 %v228
    %v266 = vunpack.c.l.b16 %v229
    %v267 = vunpack.c.l.b16 %v230
    %v268 = vunpack.c.l.b16 %v231
    %v269 = vunpack.c.l.b16 %v232
    %v270 = vunpack.c.l.b16 %v233
    %v271 = vunpack.c.l.b16 %v234
    %v272 = vunpack.c.l.b16 %v235
    %v273 = vunpack.c.l.b16 %v236
    %v274 = vunpack.c.l.b16 %v237
    %v275 = vunpack.c.l.b16 %v238
    %v276 = vunpack.c.l.b16 %v239
    %v277 = vunpack.c.l.b16 %v240
    %v278 = vunpack.c.l.b16 %v241
    %v279 = vunpack.c.l.b16 %v242
    %v280 = vunpack.c.l.b16 %v243
    %v281 = vpack.c.b16 %v266, %v265
    %v282 = vpack.c.b16 %v268, %v267
    %v283 = vpack.c.b16 %v270, %v269
    %v284 = vpack.c.b16 %v272, %v271
    %v285 = vpack.c.b16 %v274, %v273
    %v286 = vpack.c.b16 %v276, %v275
    %v287 = vpack.c.b16 %v278, %v277
    %v288 = vpack.c.b16 %v280, %v279
    %297 = vmatpush.bf16.msra.mxu0 %v288
    %298 = vmatpush.bf16.msra.mxu0 %v287
    %299 = vmatpush.bf16.msra.mxu0 %v286
    %300 = vmatpush.bf16.msra.mxu0 %v285
    %301 = vmatpush.bf16.msra.mxu0 %v284
    %302 = vmatpush.bf16.msra.mxu0 %v283
    %303 = vmatpush.bf16.msra.mxu0 %v282
    %304 = vmatpush.bf16.msra.mxu0 %v281
    %305 = vmatmul.bf16.gmra.mxu0 %v219
    %v306 = vpop.f32.mrf.mxu0
    %v307 = vadd.f32 %v247, %v306
    %v308 = vpop.f32.mrf.mxu0
    %v309 = vadd.f32 %v247, %v308
    %310 = vmatmul.bf16.gmra.mxu0 %v220
    %v311 = vpop.f32.mrf.mxu0
    %v312 = vadd.f32 %v247, %v311
    %v313 = vpop.f32.mrf.mxu0
    %v314 = vadd.f32 %v247, %v313
    %315 = vmatmul.bf16.gmra.mxu0 %v221
    %v316 = vpop.f32.mrf.mxu0
    %v317 = vadd.f32 %v247, %v316
    %v318 = vpop.f32.mrf.mxu0
    %v319 = vadd.f32 %v247, %v318
    %320 = vmatmul.bf16.gmra.mxu0 %v222
    %v321 = vpop.f32.mrf.mxu0
    %v322 = vadd.f32 %v247, %v321
    %v323 = vpop.f32.mrf.mxu0
    %v324 = vadd.f32 %v247, %v323
    %325 = vmatmul.bf16.gmra.mxu0 %v223
    %v326 = vpop.f32.mrf.mxu0
    %v327 = vadd.f32 %v247, %v326
    %v328 = vpop.f32.mrf.mxu0
    %v329 = vadd.f32 %v247, %v328
    %330 = vmatmul.bf16.gmra.mxu0 %v224
    %v331 = vpop.f32.mrf.mxu0
    %v332 = vadd.f32 %v247, %v331
    %v333 = vpop.f32.mrf.mxu0
    %v334 = vadd.f32 %v247, %v333
    %335 = vmatmul.bf16.gmra.mxu0 %v225
    %v336 = vpop.f32.mrf.mxu0
    %v337 = vadd.f32 %v247, %v336
    %v338 = vpop.f32.mrf.mxu0
    %v339 = vadd.f32 %v247, %v338
    %340 = vmatmul.bf16.gmra.mxu0 %v226
    %v341 = vpop.f32.mrf.mxu0
    %v342 = vadd.f32 %v247, %v341
    %v343 = vpop.f32.mrf.mxu0
    %v344 = vadd.f32 %v247, %v343
    %345 = vdwg.mxu0
    %v346 = vmax.f32 %v307, 0.0
    %v347 = vmax.f32 %v309, 0.0
    %v348 = vmax.f32 %v312, 0.0
    %v349 = vmax.f32 %v314, 0.0
    %v350 = vmax.f32 %v317, 0.0
    %v351 = vmax.f32 %v319, 0.0
    %v352 = vmax.f32 %v322, 0.0
    %v353 = vmax.f32 %v324, 0.0
    %v354 = vmax.f32 %v327, 0.0
    %v355 = vmax.f32 %v329, 0.0
    %v356 = vmax.f32 %v332, 0.0
    %v357 = vmax.f32 %v334, 0.0
    %v358 = vmax.f32 %v337, 0.0
    %v359 = vmax.f32 %v339, 0.0
    %v360 = vmax.f32 %v342, 0.0
    %v361 = vmax.f32 %v344, 0.0
    %v362 = vpack.c.bf16 %v347, %v346
    %v363 = vpack.c.bf16 %v349, %v348
    %v364 = vpack.c.bf16 %v351, %v350
    %v365 = vpack.c.bf16 %v353, %v352
    %v366 = vpack.c.bf16 %v355, %v354
    %v367 = vpack.c.bf16 %v357, %v356
    %v368 = vpack.c.bf16 %v359, %v358
    %v369 = vpack.c.bf16 %v361, %v360
    %s370 = scalar_lea.vmem [#allocation5], 128
    %v371 = vld [vmem:[%s370] sm:$0xf]
    %v372 = vld [vmem:[%s370 + $0x4] sm:$0xf]
    %v373 = vld [vmem:[%s370 + $0x8] sm:$0xf]
    %v374 = vld [vmem:[%s370 + $0xc] sm:$0xf]
    %v375 = vld [vmem:[%s370 + $0x10] sm:$0xf]
    %v376 = vld [vmem:[%s370 + $0x14] sm:$0xf]
    %v377 = vld [vmem:[%s370 + $0x18] sm:$0xf]
    %v378 = vld [vmem:[%s370 + $0x1c] sm:$0xf]
    %v379 = vld [vmem:[%s370 + $0x20] sm:$0xf]
    %v380 = vld [vmem:[%s370 + $0x24] sm:$0xf]
    %v381 = vld [vmem:[%s370 + $0x28] sm:$0xf]
    %v382 = vld [vmem:[%s370 + $0x2c] sm:$0xf]
    %v383 = vld [vmem:[%s370 + $0x30] sm:$0xf]
    %v384 = vld [vmem:[%s370 + $0x34] sm:$0xf]
    %v385 = vld [vmem:[%s370 + $0x38] sm:$0xf]
    %v386 = vld [vmem:[%s370 + $0x3c] sm:$0xf]
    %s387 = scalar_lea.vmem [#allocation7], 2
    %v388 = vld [vmem:[%s387] sm:$0x1]
    %v390 = vperm.slane %v388, 0
    %v408 = vunpack.c.l.b16 %v371
    %v409 = vunpack.c.l.b16 %v372
    %v410 = vunpack.c.l.b16 %v373
    %v411 = vunpack.c.l.b16 %v374
    %v412 = vunpack.c.l.b16 %v375
    %v413 = vunpack.c.l.b16 %v376
    %v414 = vunpack.c.l.b16 %v377
    %v415 = vunpack.c.l.b16 %v378
    %v416 = vunpack.c.l.b16 %v379
    %v417 = vunpack.c.l.b16 %v380
    %v418 = vunpack.c.l.b16 %v381
    %v419 = vunpack.c.l.b16 %v382
    %v420 = vunpack.c.l.b16 %v383
    %v421 = vunpack.c.l.b16 %v384
    %v422 = vunpack.c.l.b16 %v385
    %v423 = vunpack.c.l.b16 %v386
    %v424 = vpack.c.b16 %v409, %v408
    %v425 = vpack.c.b16 %v411, %v410
    %v426 = vpack.c.b16 %v413, %v412
    %v427 = vpack.c.b16 %v415, %v414
    %v428 = vpack.c.b16 %v417, %v416
    %v429 = vpack.c.b16 %v419, %v418
    %v430 = vpack.c.b16 %v421, %v420
    %v431 = vpack.c.b16 %v423, %v422
    %440 = vmatpush.bf16.msra.mxu0 %v431
    %441 = vmatpush.bf16.msra.mxu0 %v430
    %442 = vmatpush.bf16.msra.mxu0 %v429
    %443 = vmatpush.bf16.msra.mxu0 %v428
    %444 = vmatpush.bf16.msra.mxu0 %v427
    %445 = vmatpush.bf16.msra.mxu0 %v426
    %446 = vmatpush.bf16.msra.mxu0 %v425
    %447 = vmatpush.bf16.msra.mxu0 %v424
    %448 = vmatmul.bf16.gmra.mxu0 %v362
    %v449 = vpop.f32.mrf.mxu0
    %v450 = vadd.f32 %v390, %v449
    %v451 = vpop.f32.mrf.mxu0
    %v452 = vadd.f32 %v390, %v451
    %453 = vmatmul.bf16.gmra.mxu0 %v363
    %v454 = vpop.f32.mrf.mxu0
    %v455 = vadd.f32 %v390, %v454
    %v456 = vpop.f32.mrf.mxu0
    %v457 = vadd.f32 %v390, %v456
    %458 = vmatmul.bf16.gmra.mxu0 %v364
    %v459 = vpop.f32.mrf.mxu0
    %v460 = vadd.f32 %v390, %v459
    %v461 = vpop.f32.mrf.mxu0
    %v462 = vadd.f32 %v390, %v461
    %463 = vmatmul.bf16.gmra.mxu0 %v365
    %v464 = vpop.f32.mrf.mxu0
    %v465 = vadd.f32 %v390, %v464
    %v466 = vpop.f32.mrf.mxu0
    %v467 = vadd.f32 %v390, %v466
    %468 = vmatmul.bf16.gmra.mxu0 %v366
    %v469 = vpop.f32.mrf.mxu0
    %v470 = vadd.f32 %v390, %v469
    %v471 = vpop.f32.mrf.mxu0
    %v472 = vadd.f32 %v390, %v471
    %473 = vmatmul.bf16.gmra.mxu0 %v367
    %v474 = vpop.f32.mrf.mxu0
    %v475 = vadd.f32 %v390, %v474
    %v476 = vpop.f32.mrf.mxu0
    %v477 = vadd.f32 %v390, %v476
    %478 = vmatmul.bf16.gmra.mxu0 %v368
    %v479 = vpop.f32.mrf.mxu0
    %v480 = vadd.f32 %v390, %v479
    %v481 = vpop.f32.mrf.mxu0
    %v482 = vadd.f32 %v390, %v481
    %483 = vmatmul.bf16.gmra.mxu0 %v369
    %v484 = vpop.f32.mrf.mxu0
    %v485 = vadd.f32 %v390, %v484
    %v486 = vpop.f32.mrf.mxu0
    %v487 = vadd.f32 %v390, %v486
    %488 = vdwg.mxu0
    %v489 = vmax.f32 %v450, 0.0
    %v490 = vmax.f32 %v452, 0.0
    %v491 = vmax.f32 %v455, 0.0
    %v492 = vmax.f32 %v457, 0.0
    %v493 = vmax.f32 %v460, 0.0
    %v494 = vmax.f32 %v462, 0.0
    %v495 = vmax.f32 %v465, 0.0
    %v496 = vmax.f32 %v467, 0.0
    %v497 = vmax.f32 %v470, 0.0
    %v498 = vmax.f32 %v472, 0.0
    %v499 = vmax.f32 %v475, 0.0
    %v500 = vmax.f32 %v477, 0.0
    %v501 = vmax.f32 %v480, 0.0
    %v502 = vmax.f32 %v482, 0.0
    %v503 = vmax.f32 %v485, 0.0
    %v504 = vmax.f32 %v487, 0.0
    %v505 = vpack.c.bf16 %v490, %v489
    %v506 = vpack.c.bf16 %v492, %v491
    %v507 = vpack.c.bf16 %v494, %v493
    %v508 = vpack.c.bf16 %v496, %v495
    %v509 = vpack.c.bf16 %v498, %v497
    %v510 = vpack.c.bf16 %v500, %v499
    %v511 = vpack.c.bf16 %v502, %v501
    %v512 = vpack.c.bf16 %v504, %v503
    %s513 = scalar_lea.vmem [#allocation5], 192
    %v514 = vld [vmem:[%s513] sm:$0xf]
    %v515 = vld [vmem:[%s513 + $0x4] sm:$0xf]
    %v516 = vld [vmem:[%s513 + $0x8] sm:$0xf]
    %v517 = vld [vmem:[%s513 + $0xc] sm:$0xf]
    %v518 = vld [vmem:[%s513 + $0x10] sm:$0xf]
    %v519 = vld [vmem:[%s513 + $0x14] sm:$0xf]
    %v520 = vld [vmem:[%s513 + $0x18] sm:$0xf]
    %v521 = vld [vmem:[%s513 + $0x1c] sm:$0xf]
    %v522 = vld [vmem:[%s513 + $0x20] sm:$0xf]
    %v523 = vld [vmem:[%s513 + $0x24] sm:$0xf]
    %v524 = vld [vmem:[%s513 + $0x28] sm:$0xf]
    %v525 = vld [vmem:[%s513 + $0x2c] sm:$0xf]
    %v526 = vld [vmem:[%s513 + $0x30] sm:$0xf]
    %v527 = vld [vmem:[%s513 + $0x34] sm:$0xf]
    %v528 = vld [vmem:[%s513 + $0x38] sm:$0xf]
    %v529 = vld [vmem:[%s513 + $0x3c] sm:$0xf]
    %s530 = scalar_lea.vmem [#allocation7], 3
    %v531 = vld [vmem:[%s530] sm:$0x1]
    %v533 = vperm.slane %v531, 0
    %v551 = vunpack.c.l.b16 %v514
    %v552 = vunpack.c.l.b16 %v515
    %v553 = vunpack.c.l.b16 %v516
    %v554 = vunpack.c.l.b16 %v517
    %v555 = vunpack.c.l.b16 %v518
    %v556 = vunpack.c.l.b16 %v519
    %v557 = vunpack.c.l.b16 %v520
    %v558 = vunpack.c.l.b16 %v521
    %v559 = vunpack.c.l.b16 %v522
    %v560 = vunpack.c.l.b16 %v523
    %v561 = vunpack.c.l.b16 %v524
    %v562 = vunpack.c.l.b16 %v525
    %v563 = vunpack.c.l.b16 %v526
    %v564 = vunpack.c.l.b16 %v527
    %v565 = vunpack.c.l.b16 %v528
    %v566 = vunpack.c.l.b16 %v529
    %v567 = vpack.c.b16 %v552, %v551
    %v568 = vpack.c.b16 %v554, %v553
    %v569 = vpack.c.b16 %v556, %v555
    %v570 = vpack.c.b16 %v558, %v557
    %v571 = vpack.c.b16 %v560, %v559
    %v572 = vpack.c.b16 %v562, %v561
    %v573 = vpack.c.b16 %v564, %v563
    %v574 = vpack.c.b16 %v566, %v565
    %583 = vmatpush.bf16.msra.mxu0 %v574
    %584 = vmatpush.bf16.msra.mxu0 %v573
    %585 = vmatpush.bf16.msra.mxu0 %v572
    %586 = vmatpush.bf16.msra.mxu0 %v571
    %587 = vmatpush.bf16.msra.mxu0 %v570
    %588 = vmatpush.bf16.msra.mxu0 %v569
    %589 = vmatpush.bf16.msra.mxu0 %v568
    %590 = vmatpush.bf16.msra.mxu0 %v567
    %591 = vmatmul.bf16.gmra.mxu0 %v505
    %v592 = vpop.f32.mrf.mxu0
    %v593 = vadd.f32 %v533, %v592
    %v594 = vpop.f32.mrf.mxu0
    %v595 = vadd.f32 %v533, %v594
    %596 = vmatmul.bf16.gmra.mxu0 %v506
    %v597 = vpop.f32.mrf.mxu0
    %v598 = vadd.f32 %v533, %v597
    %v599 = vpop.f32.mrf.mxu0
    %v600 = vadd.f32 %v533, %v599
    %601 = vmatmul.bf16.gmra.mxu0 %v507
    %v602 = vpop.f32.mrf.mxu0
    %v603 = vadd.f32 %v533, %v602
    %v604 = vpop.f32.mrf.mxu0
    %v605 = vadd.f32 %v533, %v604
    %606 = vmatmul.bf16.gmra.mxu0 %v508
    %v607 = vpop.f32.mrf.mxu0
    %v608 = vadd.f32 %v533, %v607
    %v609 = vpop.f32.mrf.mxu0
    %v610 = vadd.f32 %v533, %v609
    %611 = vmatmul.bf16.gmra.mxu0 %v509
    %v612 = vpop.f32.mrf.mxu0
    %v613 = vadd.f32 %v533, %v612
    %v614 = vpop.f32.mrf.mxu0
    %v615 = vadd.f32 %v533, %v614
    %616 = vmatmul.bf16.gmra.mxu0 %v510
    %v617 = vpop.f32.mrf.mxu0
    %v618 = vadd.f32 %v533, %v617
    %v619 = vpop.f32.mrf.mxu0
    %v620 = vadd.f32 %v533, %v619
    %621 = vmatmul.bf16.gmra.mxu0 %v511
    %v622 = vpop.f32.mrf.mxu0
    %v623 = vadd.f32 %v533, %v622
    %v624 = vpop.f32.mrf.mxu0
    %v625 = vadd.f32 %v533, %v624
    %626 = vmatmul.bf16.gmra.mxu0 %v512
    %v627 = vpop.f32.mrf.mxu0
    %v628 = vadd.f32 %v533, %v627
    %v629 = vpop.f32.mrf.mxu0
    %v630 = vadd.f32 %v533, %v629
    %631 = vdwg.mxu0
    %v632 = vmax.f32 %v593, 0.0
    %v633 = vmax.f32 %v595, 0.0
    %v634 = vmax.f32 %v598, 0.0
    %v635 = vmax.f32 %v600, 0.0
    %v636 = vmax.f32 %v603, 0.0
    %v637 = vmax.f32 %v605, 0.0
    %v638 = vmax.f32 %v608, 0.0
    %v639 = vmax.f32 %v610, 0.0
    %v640 = vmax.f32 %v613, 0.0
    %v641 = vmax.f32 %v615, 0.0
    %v642 = vmax.f32 %v618, 0.0
    %v643 = vmax.f32 %v620, 0.0
    %v644 = vmax.f32 %v623, 0.0
    %v645 = vmax.f32 %v625, 0.0
    %v646 = vmax.f32 %v628, 0.0
    %v647 = vmax.f32 %v630, 0.0
    %v648 = vpack.c.bf16 %v633, %v632
    %v649 = vpack.c.bf16 %v635, %v634
    %v650 = vpack.c.bf16 %v637, %v636
    %v651 = vpack.c.bf16 %v639, %v638
    %v652 = vpack.c.bf16 %v641, %v640
    %v653 = vpack.c.bf16 %v643, %v642
    %v654 = vpack.c.bf16 %v645, %v644
    %v655 = vpack.c.bf16 %v647, %v646
    %s656 = scalar_lea.vmem [#allocation5], 256
    %v657 = vld [vmem:[%s656] sm:$0xf]
    %v658 = vld [vmem:[%s656 + $0x4] sm:$0xf]
    %v659 = vld [vmem:[%s656 + $0x8] sm:$0xf]
    %v660 = vld [vmem:[%s656 + $0xc] sm:$0xf]
    %v661 = vld [vmem:[%s656 + $0x10] sm:$0xf]
    %v662 = vld [vmem:[%s656 + $0x14] sm:$0xf]
    %v663 = vld [vmem:[%s656 + $0x18] sm:$0xf]
    %v664 = vld [vmem:[%s656 + $0x1c] sm:$0xf]
    %v665 = vld [vmem:[%s656 + $0x20] sm:$0xf]
    %v666 = vld [vmem:[%s656 + $0x24] sm:$0xf]
    %v667 = vld [vmem:[%s656 + $0x28] sm:$0xf]
    %v668 = vld [vmem:[%s656 + $0x2c] sm:$0xf]
    %v669 = vld [vmem:[%s656 + $0x30] sm:$0xf]
    %v670 = vld [vmem:[%s656 + $0x34] sm:$0xf]
    %v671 = vld [vmem:[%s656 + $0x38] sm:$0xf]
    %v672 = vld [vmem:[%s656 + $0x3c] sm:$0xf]
    %s673 = scalar_lea.vmem [#allocation7], 4
    %v674 = vld [vmem:[%s673] sm:$0x1]
    %v676 = vperm.slane %v674, 0
    %v694 = vunpack.c.l.b16 %v657
    %v695 = vunpack.c.l.b16 %v658
    %v696 = vunpack.c.l.b16 %v659
    %v697 = vunpack.c.l.b16 %v660
    %v698 = vunpack.c.l.b16 %v661
    %v699 = vunpack.c.l.b16 %v662
    %v700 = vunpack.c.l.b16 %v663
    %v701 = vunpack.c.l.b16 %v664
    %v702 = vunpack.c.l.b16 %v665
    %v703 = vunpack.c.l.b16 %v666
    %v704 = vunpack.c.l.b16 %v667
    %v705 = vunpack.c.l.b16 %v668
    %v706 = vunpack.c.l.b16 %v669
    %v707 = vunpack.c.l.b16 %v670
    %v708 = vunpack.c.l.b16 %v671
    %v709 = vunpack.c.l.b16 %v672
    %v710 = vpack.c.b16 %v695, %v694
    %v711 = vpack.c.b16 %v697, %v696
    %v712 = vpack.c.b16 %v699, %v698
    %v713 = vpack.c.b16 %v701, %v700
    %v714 = vpack.c.b16 %v703, %v702
    %v715 = vpack.c.b16 %v705, %v704
    %v716 = vpack.c.b16 %v707, %v706
    %v717 = vpack.c.b16 %v709, %v708
    %726 = vmatpush.bf16.msra.mxu0 %v717
    %727 = vmatpush.bf16.msra.mxu0 %v716
    %728 = vmatpush.bf16.msra.mxu0 %v715
    %729 = vmatpush.bf16.msra.mxu0 %v714
    %730 = vmatpush.bf16.msra.mxu0 %v713
    %731 = vmatpush.bf16.msra.mxu0 %v712
    %732 = vmatpush.bf16.msra.mxu0 %v711
    %733 = vmatpush.bf16.msra.mxu0 %v710
    %734 = vmatmul.bf16.gmra.mxu0 %v648
    %v735 = vpop.f32.mrf.mxu0
    %v736 = vadd.f32 %v676, %v735
    %v737 = vpop.f32.mrf.mxu0
    %v738 = vadd.f32 %v676, %v737
    %739 = vmatmul.bf16.gmra.mxu0 %v649
    %v740 = vpop.f32.mrf.mxu0
    %v741 = vadd.f32 %v676, %v740
    %v742 = vpop.f32.mrf.mxu0
    %v743 = vadd.f32 %v676, %v742
    %744 = vmatmul.bf16.gmra.mxu0 %v650
    %v745 = vpop.f32.mrf.mxu0
    %v746 = vadd.f32 %v676, %v745
    %v747 = vpop.f32.mrf.mxu0
    %v748 = vadd.f32 %v676, %v747
    %749 = vmatmul.bf16.gmra.mxu0 %v651
    %v750 = vpop.f32.mrf.mxu0
    %v751 = vadd.f32 %v676, %v750
    %v752 = vpop.f32.mrf.mxu0
    %v753 = vadd.f32 %v676, %v752
    %754 = vmatmul.bf16.gmra.mxu0 %v652
    %v755 = vpop.f32.mrf.mxu0
    %v756 = vadd.f32 %v676, %v755
    %v757 = vpop.f32.mrf.mxu0
    %v758 = vadd.f32 %v676, %v757
    %759 = vmatmul.bf16.gmra.mxu0 %v653
    %v760 = vpop.f32.mrf.mxu0
    %v761 = vadd.f32 %v676, %v760
    %v762 = vpop.f32.mrf.mxu0
    %v763 = vadd.f32 %v676, %v762
    %764 = vmatmul.bf16.gmra.mxu0 %v654
    %v765 = vpop.f32.mrf.mxu0
    %v766 = vadd.f32 %v676, %v765
    %v767 = vpop.f32.mrf.mxu0
    %v768 = vadd.f32 %v676, %v767
    %769 = vmatmul.bf16.gmra.mxu0 %v655
    %v770 = vpop.f32.mrf.mxu0
    %v771 = vadd.f32 %v676, %v770
    %v772 = vpop.f32.mrf.mxu0
    %v773 = vadd.f32 %v676, %v772
    %774 = vdwg.mxu0
    %v775 = vmax.f32 %v736, 0.0
    %v776 = vmax.f32 %v738, 0.0
    %v777 = vmax.f32 %v741, 0.0
    %v778 = vmax.f32 %v743, 0.0
    %v779 = vmax.f32 %v746, 0.0
    %v780 = vmax.f32 %v748, 0.0
    %v781 = vmax.f32 %v751, 0.0
    %v782 = vmax.f32 %v753, 0.0
    %v783 = vmax.f32 %v756, 0.0
    %v784 = vmax.f32 %v758, 0.0
    %v785 = vmax.f32 %v761, 0.0
    %v786 = vmax.f32 %v763, 0.0
    %v787 = vmax.f32 %v766, 0.0
    %v788 = vmax.f32 %v768, 0.0
    %v789 = vmax.f32 %v771, 0.0
    %v790 = vmax.f32 %v773, 0.0
    %v791 = vpack.c.bf16 %v776, %v775
    %v792 = vpack.c.bf16 %v778, %v777
    %v793 = vpack.c.bf16 %v780, %v779
    %v794 = vpack.c.bf16 %v782, %v781
    %v795 = vpack.c.bf16 %v784, %v783
    %v796 = vpack.c.bf16 %v786, %v785
    %v797 = vpack.c.bf16 %v788, %v787
    %v798 = vpack.c.bf16 %v790, %v789
    %s799 = scalar_lea.vmem [#allocation5], 320
    %v800 = vld [vmem:[%s799] sm:$0xf]
    %v801 = vld [vmem:[%s799 + $0x4] sm:$0xf]
    %v802 = vld [vmem:[%s799 + $0x8] sm:$0xf]
    %v803 = vld [vmem:[%s799 + $0xc] sm:$0xf]
    %v804 = vld [vmem:[%s799 + $0x10] sm:$0xf]
    %v805 = vld [vmem:[%s799 + $0x14] sm:$0xf]
    %v806 = vld [vmem:[%s799 + $0x18] sm:$0xf]
    %v807 = vld [vmem:[%s799 + $0x1c] sm:$0xf]
    %v808 = vld [vmem:[%s799 + $0x20] sm:$0xf]
    %v809 = vld [vmem:[%s799 + $0x24] sm:$0xf]
    %v810 = vld [vmem:[%s799 + $0x28] sm:$0xf]
    %v811 = vld [vmem:[%s799 + $0x2c] sm:$0xf]
    %v812 = vld [vmem:[%s799 + $0x30] sm:$0xf]
    %v813 = vld [vmem:[%s799 + $0x34] sm:$0xf]
    %v814 = vld [vmem:[%s799 + $0x38] sm:$0xf]
    %v815 = vld [vmem:[%s799 + $0x3c] sm:$0xf]
    %s816 = scalar_lea.vmem [#allocation7], 5
    %v817 = vld [vmem:[%s816] sm:$0x1]
    %v819 = vperm.slane %v817, 0
    %v837 = vunpack.c.l.b16 %v800
    %v838 = vunpack.c.l.b16 %v801
    %v839 = vunpack.c.l.b16 %v802
    %v840 = vunpack.c.l.b16 %v803
    %v841 = vunpack.c.l.b16 %v804
    %v842 = vunpack.c.l.b16 %v805
    %v843 = vunpack.c.l.b16 %v806
    %v844 = vunpack.c.l.b16 %v807
    %v845 = vunpack.c.l.b16 %v808
    %v846 = vunpack.c.l.b16 %v809
    %v847 = vunpack.c.l.b16 %v810
    %v848 = vunpack.c.l.b16 %v811
    %v849 = vunpack.c.l.b16 %v812
    %v850 = vunpack.c.l.b16 %v813
    %v851 = vunpack.c.l.b16 %v814
    %v852 = vunpack.c.l.b16 %v815
    %v853 = vpack.c.b16 %v838, %v837
    %v854 = vpack.c.b16 %v840, %v839
    %v855 = vpack.c.b16 %v842, %v841
    %v856 = vpack.c.b16 %v844, %v843
    %v857 = vpack.c.b16 %v846, %v845
    %v858 = vpack.c.b16 %v848, %v847
    %v859 = vpack.c.b16 %v850, %v849
    %v860 = vpack.c.b16 %v852, %v851
    %869 = vmatpush.bf16.msra.mxu0 %v860
    %870 = vmatpush.bf16.msra.mxu0 %v859
    %871 = vmatpush.bf16.msra.mxu0 %v858
    %872 = vmatpush.bf16.msra.mxu0 %v857
    %873 = vmatpush.bf16.msra.mxu0 %v856
    %874 = vmatpush.bf16.msra.mxu0 %v855
    %875 = vmatpush.bf16.msra.mxu0 %v854
    %876 = vmatpush.bf16.msra.mxu0 %v853
    %877 = vmatmul.bf16.gmra.mxu0 %v791
    %v878 = vpop.f32.mrf.mxu0
    %v879 = vadd.f32 %v819, %v878
    %v880 = vpop.f32.mrf.mxu0
    %v881 = vadd.f32 %v819, %v880
    %882 = vmatmul.bf16.gmra.mxu0 %v792
    %v883 = vpop.f32.mrf.mxu0
    %v884 = vadd.f32 %v819, %v883
    %v885 = vpop.f32.mrf.mxu0
    %v886 = vadd.f32 %v819, %v885
    %887 = vmatmul.bf16.gmra.mxu0 %v793
    %v888 = vpop.f32.mrf.mxu0
    %v889 = vadd.f32 %v819, %v888
    %v890 = vpop.f32.mrf.mxu0
    %v891 = vadd.f32 %v819, %v890
    %892 = vmatmul.bf16.gmra.mxu0 %v794
    %v893 = vpop.f32.mrf.mxu0
    %v894 = vadd.f32 %v819, %v893
    %v895 = vpop.f32.mrf.mxu0
    %v896 = vadd.f32 %v819, %v895
    %897 = vmatmul.bf16.gmra.mxu0 %v795
    %v898 = vpop.f32.mrf.mxu0
    %v899 = vadd.f32 %v819, %v898
    %v900 = vpop.f32.mrf.mxu0
    %v901 = vadd.f32 %v819, %v900
    %902 = vmatmul.bf16.gmra.mxu0 %v796
    %v903 = vpop.f32.mrf.mxu0
    %v904 = vadd.f32 %v819, %v903
    %v905 = vpop.f32.mrf.mxu0
    %v906 = vadd.f32 %v819, %v905
    %907 = vmatmul.bf16.gmra.mxu0 %v797
    %v908 = vpop.f32.mrf.mxu0
    %v909 = vadd.f32 %v819, %v908
    %v910 = vpop.f32.mrf.mxu0
    %v911 = vadd.f32 %v819, %v910
    %912 = vmatmul.bf16.gmra.mxu0 %v798
    %v913 = vpop.f32.mrf.mxu0
    %v914 = vadd.f32 %v819, %v913
    %v915 = vpop.f32.mrf.mxu0
    %v916 = vadd.f32 %v819, %v915
    %917 = vdwg.mxu0
    %v918 = vmax.f32 %v879, 0.0
    %v919 = vmax.f32 %v881, 0.0
    %v920 = vmax.f32 %v884, 0.0
    %v921 = vmax.f32 %v886, 0.0
    %v922 = vmax.f32 %v889, 0.0
    %v923 = vmax.f32 %v891, 0.0
    %v924 = vmax.f32 %v894, 0.0
    %v925 = vmax.f32 %v896, 0.0
    %v926 = vmax.f32 %v899, 0.0
    %v927 = vmax.f32 %v901, 0.0
    %v928 = vmax.f32 %v904, 0.0
    %v929 = vmax.f32 %v906, 0.0
    %v930 = vmax.f32 %v909, 0.0
    %v931 = vmax.f32 %v911, 0.0
    %v932 = vmax.f32 %v914, 0.0
    %v933 = vmax.f32 %v916, 0.0
    %v934 = vpack.c.bf16 %v919, %v918
    %v935 = vpack.c.bf16 %v921, %v920
    %v936 = vpack.c.bf16 %v923, %v922
    %v937 = vpack.c.bf16 %v925, %v924
    %v938 = vpack.c.bf16 %v927, %v926
    %v939 = vpack.c.bf16 %v929, %v928
    %v940 = vpack.c.bf16 %v931, %v930
    %v941 = vpack.c.bf16 %v933, %v932
    %s942 = scalar_lea.vmem [#allocation5], 384
    %v943 = vld [vmem:[%s942] sm:$0xf]
    %v944 = vld [vmem:[%s942 + $0x4] sm:$0xf]
    %v945 = vld [vmem:[%s942 + $0x8] sm:$0xf]
    %v946 = vld [vmem:[%s942 + $0xc] sm:$0xf]
    %v947 = vld [vmem:[%s942 + $0x10] sm:$0xf]
    %v948 = vld [vmem:[%s942 + $0x14] sm:$0xf]
    %v949 = vld [vmem:[%s942 + $0x18] sm:$0xf]
    %v950 = vld [vmem:[%s942 + $0x1c] sm:$0xf]
    %v951 = vld [vmem:[%s942 + $0x20] sm:$0xf]
    %v952 = vld [vmem:[%s942 + $0x24] sm:$0xf]
    %v953 = vld [vmem:[%s942 + $0x28] sm:$0xf]
    %v954 = vld [vmem:[%s942 + $0x2c] sm:$0xf]
    %v955 = vld [vmem:[%s942 + $0x30] sm:$0xf]
    %v956 = vld [vmem:[%s942 + $0x34] sm:$0xf]
    %v957 = vld [vmem:[%s942 + $0x38] sm:$0xf]
    %v958 = vld [vmem:[%s942 + $0x3c] sm:$0xf]
    %s959 = scalar_lea.vmem [#allocation7], 6
    %v960 = vld [vmem:[%s959] sm:$0x1]
    %v962 = vperm.slane %v960, 0
    %v980 = vunpack.c.l.b16 %v943
    %v981 = vunpack.c.l.b16 %v944
    %v982 = vunpack.c.l.b16 %v945
    %v983 = vunpack.c.l.b16 %v946
    %v984 = vunpack.c.l.b16 %v947
    %v985 = vunpack.c.l.b16 %v948
    %v986 = vunpack.c.l.b16 %v949
    %v987 = vunpack.c.l.b16 %v950
    %v988 = vunpack.c.l.b16 %v951
    %v989 = vunpack.c.l.b16 %v952
    %v990 = vunpack.c.l.b16 %v953
    %v991 = vunpack.c.l.b16 %v954
    %v992 = vunpack.c.l.b16 %v955
    %v993 = vunpack.c.l.b16 %v956
    %v994 = vunpack.c.l.b16 %v957
    %v995 = vunpack.c.l.b16 %v958
    %v996 = vpack.c.b16 %v981, %v980
    %v997 = vpack.c.b16 %v983, %v982
    %v998 = vpack.c.b16 %v985, %v984
    %v999 = vpack.c.b16 %v987, %v986
    %v1000 = vpack.c.b16 %v989, %v988
    %v1001 = vpack.c.b16 %v991, %v990
    %v1002 = vpack.c.b16 %v993, %v992
    %v1003 = vpack.c.b16 %v995, %v994
    %1012 = vmatpush.bf16.msra.mxu0 %v1003
    %1013 = vmatpush.bf16.msra.mxu0 %v1002
    %1014 = vmatpush.bf16.msra.mxu0 %v1001
    %1015 = vmatpush.bf16.msra.mxu0 %v1000
    %1016 = vmatpush.bf16.msra.mxu0 %v999
    %1017 = vmatpush.bf16.msra.mxu0 %v998
    %1018 = vmatpush.bf16.msra.mxu0 %v997
    %1019 = vmatpush.bf16.msra.mxu0 %v996
    %1020 = vmatmul.bf16.gmra.mxu0 %v934
    %v1021 = vpop.f32.mrf.mxu0
    %v1022 = vadd.f32 %v962, %v1021
    %v1023 = vpop.f32.mrf.mxu0
    %v1024 = vadd.f32 %v962, %v1023
    %1025 = vmatmul.bf16.gmra.mxu0 %v935
    %v1026 = vpop.f32.mrf.mxu0
    %v1027 = vadd.f32 %v962, %v1026
    %v1028 = vpop.f32.mrf.mxu0
    %v1029 = vadd.f32 %v962, %v1028
    %1030 = vmatmul.bf16.gmra.mxu0 %v936
    %v1031 = vpop.f32.mrf.mxu0
    %v1032 = vadd.f32 %v962, %v1031
    %v1033 = vpop.f32.mrf.mxu0
    %v1034 = vadd.f32 %v962, %v1033
    %1035 = vmatmul.bf16.gmra.mxu0 %v937
    %v1036 = vpop.f32.mrf.mxu0
    %v1037 = vadd.f32 %v962, %v1036
    %v1038 = vpop.f32.mrf.mxu0
    %v1039 = vadd.f32 %v962, %v1038
    %1040 = vmatmul.bf16.gmra.mxu0 %v938
    %v1041 = vpop.f32.mrf.mxu0
    %v1042 = vadd.f32 %v962, %v1041
    %v1043 = vpop.f32.mrf.mxu0
    %v1044 = vadd.f32 %v962, %v1043
    %1045 = vmatmul.bf16.gmra.mxu0 %v939
    %v1046 = vpop.f32.mrf.mxu0
    %v1047 = vadd.f32 %v962, %v1046
    %v1048 = vpop.f32.mrf.mxu0
    %v1049 = vadd.f32 %v962, %v1048
    %1050 = vmatmul.bf16.gmra.mxu0 %v940
    %v1051 = vpop.f32.mrf.mxu0
    %v1052 = vadd.f32 %v962, %v1051
    %v1053 = vpop.f32.mrf.mxu0
    %v1054 = vadd.f32 %v962, %v1053
    %1055 = vmatmul.bf16.gmra.mxu0 %v941
    %v1056 = vpop.f32.mrf.mxu0
    %v1057 = vadd.f32 %v962, %v1056
    %v1058 = vpop.f32.mrf.mxu0
    %v1059 = vadd.f32 %v962, %v1058
    %1060 = vdwg.mxu0
    %v1061 = vmax.f32 %v1022, 0.0
    %v1062 = vmax.f32 %v1024, 0.0
    %v1063 = vmax.f32 %v1027, 0.0
    %v1064 = vmax.f32 %v1029, 0.0
    %v1065 = vmax.f32 %v1032, 0.0
    %v1066 = vmax.f32 %v1034, 0.0
    %v1067 = vmax.f32 %v1037, 0.0
    %v1068 = vmax.f32 %v1039, 0.0
    %v1069 = vmax.f32 %v1042, 0.0
    %v1070 = vmax.f32 %v1044, 0.0
    %v1071 = vmax.f32 %v1047, 0.0
    %v1072 = vmax.f32 %v1049, 0.0
    %v1073 = vmax.f32 %v1052, 0.0
    %v1074 = vmax.f32 %v1054, 0.0
    %v1075 = vmax.f32 %v1057, 0.0
    %v1076 = vmax.f32 %v1059, 0.0
    %v1077 = vpack.c.bf16 %v1062, %v1061
    %v1078 = vpack.c.bf16 %v1064, %v1063
    %v1079 = vpack.c.bf16 %v1066, %v1065
    %v1080 = vpack.c.bf16 %v1068, %v1067
    %v1081 = vpack.c.bf16 %v1070, %v1069
    %v1082 = vpack.c.bf16 %v1072, %v1071
    %v1083 = vpack.c.bf16 %v1074, %v1073
    %v1084 = vpack.c.bf16 %v1076, %v1075
    %s1085 = scalar_lea.vmem [#allocation5], 448
    %v1086 = vld [vmem:[%s1085] sm:$0xf]
    %v1087 = vld [vmem:[%s1085 + $0x4] sm:$0xf]
    %v1088 = vld [vmem:[%s1085 + $0x8] sm:$0xf]
    %v1089 = vld [vmem:[%s1085 + $0xc] sm:$0xf]
    %v1090 = vld [vmem:[%s1085 + $0x10] sm:$0xf]
    %v1091 = vld [vmem:[%s1085 + $0x14] sm:$0xf]
    %v1092 = vld [vmem:[%s1085 + $0x18] sm:$0xf]
    %v1093 = vld [vmem:[%s1085 + $0x1c] sm:$0xf]
    %v1094 = vld [vmem:[%s1085 + $0x20] sm:$0xf]
    %v1095 = vld [vmem:[%s1085 + $0x24] sm:$0xf]
    %v1096 = vld [vmem:[%s1085 + $0x28] sm:$0xf]
    %v1097 = vld [vmem:[%s1085 + $0x2c] sm:$0xf]
    %v1098 = vld [vmem:[%s1085 + $0x30] sm:$0xf]
    %v1099 = vld [vmem:[%s1085 + $0x34] sm:$0xf]
    %v1100 = vld [vmem:[%s1085 + $0x38] sm:$0xf]
    %v1101 = vld [vmem:[%s1085 + $0x3c] sm:$0xf]
    %s1102 = scalar_lea.vmem [#allocation7], 7
    %v1103 = vld [vmem:[%s1102] sm:$0x1]
    %v1105 = vperm.slane %v1103, 0
    %v1123 = vunpack.c.l.b16 %v1086
    %v1124 = vunpack.c.l.b16 %v1087
    %v1125 = vunpack.c.l.b16 %v1088
    %v1126 = vunpack.c.l.b16 %v1089
    %v1127 = vunpack.c.l.b16 %v1090
    %v1128 = vunpack.c.l.b16 %v1091
    %v1129 = vunpack.c.l.b16 %v1092
    %v1130 = vunpack.c.l.b16 %v1093
    %v1131 = vunpack.c.l.b16 %v1094
    %v1132 = vunpack.c.l.b16 %v1095
    %v1133 = vunpack.c.l.b16 %v1096
    %v1134 = vunpack.c.l.b16 %v1097
    %v1135 = vunpack.c.l.b16 %v1098
    %v1136 = vunpack.c.l.b16 %v1099
    %v1137 = vunpack.c.l.b16 %v1100
    %v1138 = vunpack.c.l.b16 %v1101
    %v1139 = vpack.c.b16 %v1124, %v1123
    %v1140 = vpack.c.b16 %v1126, %v1125
    %v1141 = vpack.c.b16 %v1128, %v1127
    %v1142 = vpack.c.b16 %v1130, %v1129
    %v1143 = vpack.c.b16 %v1132, %v1131
    %v1144 = vpack.c.b16 %v1134, %v1133
    %v1145 = vpack.c.b16 %v1136, %v1135
    %v1146 = vpack.c.b16 %v1138, %v1137
    %1155 = vmatpush.bf16.msra.mxu0 %v1146
    %1156 = vmatpush.bf16.msra.mxu0 %v1145
    %1157 = vmatpush.bf16.msra.mxu0 %v1144
    %1158 = vmatpush.bf16.msra.mxu0 %v1143
    %1159 = vmatpush.bf16.msra.mxu0 %v1142
    %1160 = vmatpush.bf16.msra.mxu0 %v1141
    %1161 = vmatpush.bf16.msra.mxu0 %v1140
    %1162 = vmatpush.bf16.msra.mxu0 %v1139
    %1163 = vmatmul.bf16.gmra.mxu0 %v1077
    %v1164 = vpop.f32.mrf.mxu0
    %v1165 = vadd.f32 %v1105, %v1164
    %v1166 = vpop.f32.mrf.mxu0
    %v1167 = vadd.f32 %v1105, %v1166
    %1168 = vmatmul.bf16.gmra.mxu0 %v1078
    %v1169 = vpop.f32.mrf.mxu0
    %v1170 = vadd.f32 %v1105, %v1169
    %v1171 = vpop.f32.mrf.mxu0
    %v1172 = vadd.f32 %v1105, %v1171
    %1173 = vmatmul.bf16.gmra.mxu0 %v1079
    %v1174 = vpop.f32.mrf.mxu0
    %v1175 = vadd.f32 %v1105, %v1174
    %v1176 = vpop.f32.mrf.mxu0
    %v1177 = vadd.f32 %v1105, %v1176
    %1178 = vmatmul.bf16.gmra.mxu0 %v1080
    %v1179 = vpop.f32.mrf.mxu0
    %v1180 = vadd.f32 %v1105, %v1179
    %v1181 = vpop.f32.mrf.mxu0
    %v1182 = vadd.f32 %v1105, %v1181
    %1183 = vmatmul.bf16.gmra.mxu0 %v1081
    %v1184 = vpop.f32.mrf.mxu0
    %v1185 = vadd.f32 %v1105, %v1184
    %v1186 = vpop.f32.mrf.mxu0
    %v1187 = vadd.f32 %v1105, %v1186
    %1188 = vmatmul.bf16.gmra.mxu0 %v1082
    %v1189 = vpop.f32.mrf.mxu0
    %v1190 = vadd.f32 %v1105, %v1189
    %v1191 = vpop.f32.mrf.mxu0
    %v1192 = vadd.f32 %v1105, %v1191
    %1193 = vmatmul.bf16.gmra.mxu0 %v1083
    %v1194 = vpop.f32.mrf.mxu0
    %v1195 = vadd.f32 %v1105, %v1194
    %v1196 = vpop.f32.mrf.mxu0
    %v1197 = vadd.f32 %v1105, %v1196
    %1198 = vmatmul.bf16.gmra.mxu0 %v1084
    %v1199 = vpop.f32.mrf.mxu0
    %v1200 = vadd.f32 %v1105, %v1199
    %v1201 = vpop.f32.mrf.mxu0
    %v1202 = vadd.f32 %v1105, %v1201
    %1203 = vdwg.mxu0
    %v1204 = vxor.u32 %v1165, 2147483648
    %v1205 = vxor.u32 %v1167, 2147483648
    %v1206 = vxor.u32 %v1170, 2147483648
    %v1207 = vxor.u32 %v1172, 2147483648
    %v1208 = vxor.u32 %v1175, 2147483648
    %v1209 = vxor.u32 %v1177, 2147483648
    %v1210 = vxor.u32 %v1180, 2147483648
    %v1211 = vxor.u32 %v1182, 2147483648
    %v1212 = vxor.u32 %v1185, 2147483648
    %v1213 = vxor.u32 %v1187, 2147483648
    %v1214 = vxor.u32 %v1190, 2147483648
    %v1215 = vxor.u32 %v1192, 2147483648
    %v1216 = vxor.u32 %v1195, 2147483648
    %v1217 = vxor.u32 %v1197, 2147483648
    %v1218 = vxor.u32 %v1200, 2147483648
    %v1219 = vxor.u32 %v1202, 2147483648
    %v1220 = vmul.f32 %v1204, 1.442695
    %v1221 = vpow.pop %v1220
    %v1222 = vmul.f32 %v1205, 1.442695
    %v1223 = vpow.pop %v1222
    %v1224 = vmul.f32 %v1206, 1.442695
    %v1225 = vpow.pop %v1224
    %v1226 = vmul.f32 %v1207, 1.442695
    %v1227 = vpow.pop %v1226
    %v1228 = vmul.f32 %v1208, 1.442695
    %v1229 = vpow.pop %v1228
    %v1230 = vmul.f32 %v1209, 1.442695
    %v1231 = vpow.pop %v1230
    %v1232 = vmul.f32 %v1210, 1.442695
    %v1233 = vpow.pop %v1232
    %v1234 = vmul.f32 %v1211, 1.442695
    %v1235 = vpow.pop %v1234
    %v1236 = vmul.f32 %v1212, 1.442695
    %v1237 = vpow.pop %v1236
    %v1238 = vmul.f32 %v1213, 1.442695
    %v1239 = vpow.pop %v1238
    %v1240 = vmul.f32 %v1214, 1.442695
    %v1241 = vpow.pop %v1240
    %v1242 = vmul.f32 %v1215, 1.442695
    %v1243 = vpow.pop %v1242
    %v1244 = vmul.f32 %v1216, 1.442695
    %v1245 = vpow.pop %v1244
    %v1246 = vmul.f32 %v1217, 1.442695
    %v1247 = vpow.pop %v1246
    %v1248 = vmul.f32 %v1218, 1.442695
    %v1249 = vpow.pop %v1248
    %v1250 = vmul.f32 %v1219, 1.442695
    %v1251 = vpow.pop %v1250
    %v1252 = vadd.f32 %v1221, 1.0
    %v1253 = vadd.f32 %v1223, 1.0
    %v1254 = vadd.f32 %v1225, 1.0
    %v1255 = vadd.f32 %v1227, 1.0
    %v1256 = vadd.f32 %v1229, 1.0
    %v1257 = vadd.f32 %v1231, 1.0
    %v1258 = vadd.f32 %v1233, 1.0
    %v1259 = vadd.f32 %v1235, 1.0
    %v1260 = vadd.f32 %v1237, 1.0
    %v1261 = vadd.f32 %v1239, 1.0
    %v1262 = vadd.f32 %v1241, 1.0
    %v1263 = vadd.f32 %v1243, 1.0
    %v1264 = vadd.f32 %v1245, 1.0
    %v1265 = vadd.f32 %v1247, 1.0
    %v1266 = vadd.f32 %v1249, 1.0
    %v1267 = vadd.f32 %v1251, 1.0
    %v1268 = vrcp.pop %v1252
    %v1269 = vmul.f32 %v1252, %v1268
    %v1270 = vsub.f32 1.0, %v1269
    %v1271 = vmul.f32 %v1268, %v1270
    %v1272 = vadd.f32 %v1268, %v1271
    %vm1273 = vweird.f32 %v1252
    %vm1274 = vweird.f32 %v1268
    %vm1275 = vmor %vm1273, %vm1274
    %v1276 = vsel %vm1275, %v1268, %v1272
    %v1277 = vand.u32 2147483647, %v1252
    %vm1278 = vcmp.eq.f32.partialorder %v1277, 8.507059e+37
    %v1279 = vand.u32 %v1252, 2147483648
    %v1280 = vor.u32 1.1754944e-38, %v1279
    %v1281 = vsel %vm1278, %v1280, %v1276
    %v1282 = vmul.f32 1.0, %v1281
    %v1283 = vrcp.pop %v1253
    %v1284 = vmul.f32 %v1253, %v1283
    %v1285 = vsub.f32 1.0, %v1284
    %v1286 = vmul.f32 %v1283, %v1285
    %v1287 = vadd.f32 %v1283, %v1286
    %vm1288 = vweird.f32 %v1253
    %vm1289 = vweird.f32 %v1283
    %vm1290 = vmor %vm1288, %vm1289
    %v1291 = vsel %vm1290, %v1283, %v1287
    %v1292 = vand.u32 2147483647, %v1253
    %vm1293 = vcmp.eq.f32.partialorder %v1292, 8.507059e+37
    %v1294 = vand.u32 %v1253, 2147483648
    %v1295 = vor.u32 1.1754944e-38, %v1294
    %v1296 = vsel %vm1293, %v1295, %v1291
    %v1297 = vmul.f32 1.0, %v1296
    %v1298 = vrcp.pop %v1254
    %v1299 = vmul.f32 %v1254, %v1298
    %v1300 = vsub.f32 1.0, %v1299
    %v1301 = vmul.f32 %v1298, %v1300
    %v1302 = vadd.f32 %v1298, %v1301
    %vm1303 = vweird.f32 %v1254
    %vm1304 = vweird.f32 %v1298
    %vm1305 = vmor %vm1303, %vm1304
    %v1306 = vsel %vm1305, %v1298, %v1302
    %v1307 = vand.u32 2147483647, %v1254
    %vm1308 = vcmp.eq.f32.partialorder %v1307, 8.507059e+37
    %v1309 = vand.u32 %v1254, 2147483648
    %v1310 = vor.u32 1.1754944e-38, %v1309
    %v1311 = vsel %vm1308, %v1310, %v1306
    %v1312 = vmul.f32 1.0, %v1311
    %v1313 = vrcp.pop %v1255
    %v1314 = vmul.f32 %v1255, %v1313
    %v1315 = vsub.f32 1.0, %v1314
    %v1316 = vmul.f32 %v1313, %v1315
    %v1317 = vadd.f32 %v1313, %v1316
    %vm1318 = vweird.f32 %v1255
    %vm1319 = vweird.f32 %v1313
    %vm1320 = vmor %vm1318, %vm1319
    %v1321 = vsel %vm1320, %v1313, %v1317
    %v1322 = vand.u32 2147483647, %v1255
    %vm1323 = vcmp.eq.f32.partialorder %v1322, 8.507059e+37
    %v1324 = vand.u32 %v1255, 2147483648
    %v1325 = vor.u32 1.1754944e-38, %v1324
    %v1326 = vsel %vm1323, %v1325, %v1321
    %v1327 = vmul.f32 1.0, %v1326
    %v1328 = vrcp.pop %v1256
    %v1329 = vmul.f32 %v1256, %v1328
    %v1330 = vsub.f32 1.0, %v1329
    %v1331 = vmul.f32 %v1328, %v1330
    %v1332 = vadd.f32 %v1328, %v1331
    %vm1333 = vweird.f32 %v1256
    %vm1334 = vweird.f32 %v1328
    %vm1335 = vmor %vm1333, %vm1334
    %v1336 = vsel %vm1335, %v1328, %v1332
    %v1337 = vand.u32 2147483647, %v1256
    %vm1338 = vcmp.eq.f32.partialorder %v1337, 8.507059e+37
    %v1339 = vand.u32 %v1256, 2147483648
    %v1340 = vor.u32 1.1754944e-38, %v1339
    %v1341 = vsel %vm1338, %v1340, %v1336
    %v1342 = vmul.f32 1.0, %v1341
    %v1343 = vrcp.pop %v1257
    %v1344 = vmul.f32 %v1257, %v1343
    %v1345 = vsub.f32 1.0, %v1344
    %v1346 = vmul.f32 %v1343, %v1345
    %v1347 = vadd.f32 %v1343, %v1346
    %vm1348 = vweird.f32 %v1257
    %vm1349 = vweird.f32 %v1343
    %vm1350 = vmor %vm1348, %vm1349
    %v1351 = vsel %vm1350, %v1343, %v1347
    %v1352 = vand.u32 2147483647, %v1257
    %vm1353 = vcmp.eq.f32.partialorder %v1352, 8.507059e+37
    %v1354 = vand.u32 %v1257, 2147483648
    %v1355 = vor.u32 1.1754944e-38, %v1354
    %v1356 = vsel %vm1353, %v1355, %v1351
    %v1357 = vmul.f32 1.0, %v1356
    %v1358 = vrcp.pop %v1258
    %v1359 = vmul.f32 %v1258, %v1358
    %v1360 = vsub.f32 1.0, %v1359
    %v1361 = vmul.f32 %v1358, %v1360
    %v1362 = vadd.f32 %v1358, %v1361
    %vm1363 = vweird.f32 %v1258
    %vm1364 = vweird.f32 %v1358
    %vm1365 = vmor %vm1363, %vm1364
    %v1366 = vsel %vm1365, %v1358, %v1362
    %v1367 = vand.u32 2147483647, %v1258
    %vm1368 = vcmp.eq.f32.partialorder %v1367, 8.507059e+37
    %v1369 = vand.u32 %v1258, 2147483648
    %v1370 = vor.u32 1.1754944e-38, %v1369
    %v1371 = vsel %vm1368, %v1370, %v1366
    %v1372 = vmul.f32 1.0, %v1371
    %v1373 = vrcp.pop %v1259
    %v1374 = vmul.f32 %v1259, %v1373
    %v1375 = vsub.f32 1.0, %v1374
    %v1376 = vmul.f32 %v1373, %v1375
    %v1377 = vadd.f32 %v1373, %v1376
    %vm1378 = vweird.f32 %v1259
    %vm1379 = vweird.f32 %v1373
    %vm1380 = vmor %vm1378, %vm1379
    %v1381 = vsel %vm1380, %v1373, %v1377
    %v1382 = vand.u32 2147483647, %v1259
    %vm1383 = vcmp.eq.f32.partialorder %v1382, 8.507059e+37
    %v1384 = vand.u32 %v1259, 2147483648
    %v1385 = vor.u32 1.1754944e-38, %v1384
    %v1386 = vsel %vm1383, %v1385, %v1381
    %v1387 = vmul.f32 1.0, %v1386
    %v1388 = vrcp.pop %v1260
    %v1389 = vmul.f32 %v1260, %v1388
    %v1390 = vsub.f32 1.0, %v1389
    %v1391 = vmul.f32 %v1388, %v1390
    %v1392 = vadd.f32 %v1388, %v1391
    %vm1393 = vweird.f32 %v1260
    %vm1394 = vweird.f32 %v1388
    %vm1395 = vmor %vm1393, %vm1394
    %v1396 = vsel %vm1395, %v1388, %v1392
    %v1397 = vand.u32 2147483647, %v1260
    %vm1398 = vcmp.eq.f32.partialorder %v1397, 8.507059e+37
    %v1399 = vand.u32 %v1260, 2147483648
    %v1400 = vor.u32 1.1754944e-38, %v1399
    %v1401 = vsel %vm1398, %v1400, %v1396
    %v1402 = vmul.f32 1.0, %v1401
    %v1403 = vrcp.pop %v1261
    %v1404 = vmul.f32 %v1261, %v1403
    %v1405 = vsub.f32 1.0, %v1404
    %v1406 = vmul.f32 %v1403, %v1405
    %v1407 = vadd.f32 %v1403, %v1406
    %vm1408 = vweird.f32 %v1261
    %vm1409 = vweird.f32 %v1403
    %vm1410 = vmor %vm1408, %vm1409
    %v1411 = vsel %vm1410, %v1403, %v1407
    %v1412 = vand.u32 2147483647, %v1261
    %vm1413 = vcmp.eq.f32.partialorder %v1412, 8.507059e+37
    %v1414 = vand.u32 %v1261, 2147483648
    %v1415 = vor.u32 1.1754944e-38, %v1414
    %v1416 = vsel %vm1413, %v1415, %v1411
    %v1417 = vmul.f32 1.0, %v1416
    %v1418 = vrcp.pop %v1262
    %v1419 = vmul.f32 %v1262, %v1418
    %v1420 = vsub.f32 1.0, %v1419
    %v1421 = vmul.f32 %v1418, %v1420
    %v1422 = vadd.f32 %v1418, %v1421
    %vm1423 = vweird.f32 %v1262
    %vm1424 = vweird.f32 %v1418
    %vm1425 = vmor %vm1423, %vm1424
    %v1426 = vsel %vm1425, %v1418, %v1422
    %v1427 = vand.u32 2147483647, %v1262
    %vm1428 = vcmp.eq.f32.partialorder %v1427, 8.507059e+37
    %v1429 = vand.u32 %v1262, 2147483648
    %v1430 = vor.u32 1.1754944e-38, %v1429
    %v1431 = vsel %vm1428, %v1430, %v1426
    %v1432 = vmul.f32 1.0, %v1431
    %v1433 = vrcp.pop %v1263
    %v1434 = vmul.f32 %v1263, %v1433
    %v1435 = vsub.f32 1.0, %v1434
    %v1436 = vmul.f32 %v1433, %v1435
    %v1437 = vadd.f32 %v1433, %v1436
    %vm1438 = vweird.f32 %v1263
    %vm1439 = vweird.f32 %v1433
    %vm1440 = vmor %vm1438, %vm1439
    %v1441 = vsel %vm1440, %v1433, %v1437
    %v1442 = vand.u32 2147483647, %v1263
    %vm1443 = vcmp.eq.f32.partialorder %v1442, 8.507059e+37
    %v1444 = vand.u32 %v1263, 2147483648
    %v1445 = vor.u32 1.1754944e-38, %v1444
    %v1446 = vsel %vm1443, %v1445, %v1441
    %v1447 = vmul.f32 1.0, %v1446
    %v1448 = vrcp.pop %v1264
    %v1449 = vmul.f32 %v1264, %v1448
    %v1450 = vsub.f32 1.0, %v1449
    %v1451 = vmul.f32 %v1448, %v1450
    %v1452 = vadd.f32 %v1448, %v1451
    %vm1453 = vweird.f32 %v1264
    %vm1454 = vweird.f32 %v1448
    %vm1455 = vmor %vm1453, %vm1454
    %v1456 = vsel %vm1455, %v1448, %v1452
    %v1457 = vand.u32 2147483647, %v1264
    %vm1458 = vcmp.eq.f32.partialorder %v1457, 8.507059e+37
    %v1459 = vand.u32 %v1264, 2147483648
    %v1460 = vor.u32 1.1754944e-38, %v1459
    %v1461 = vsel %vm1458, %v1460, %v1456
    %v1462 = vmul.f32 1.0, %v1461
    %v1463 = vrcp.pop %v1265
    %v1464 = vmul.f32 %v1265, %v1463
    %v1465 = vsub.f32 1.0, %v1464
    %v1466 = vmul.f32 %v1463, %v1465
    %v1467 = vadd.f32 %v1463, %v1466
    %vm1468 = vweird.f32 %v1265
    %vm1469 = vweird.f32 %v1463
    %vm1470 = vmor %vm1468, %vm1469
    %v1471 = vsel %vm1470, %v1463, %v1467
    %v1472 = vand.u32 2147483647, %v1265
    %vm1473 = vcmp.eq.f32.partialorder %v1472, 8.507059e+37
    %v1474 = vand.u32 %v1265, 2147483648
    %v1475 = vor.u32 1.1754944e-38, %v1474
    %v1476 = vsel %vm1473, %v1475, %v1471
    %v1477 = vmul.f32 1.0, %v1476
    %v1478 = vrcp.pop %v1266
    %v1479 = vmul.f32 %v1266, %v1478
    %v1480 = vsub.f32 1.0, %v1479
    %v1481 = vmul.f32 %v1478, %v1480
    %v1482 = vadd.f32 %v1478, %v1481
    %vm1483 = vweird.f32 %v1266
    %vm1484 = vweird.f32 %v1478
    %vm1485 = vmor %vm1483, %vm1484
    %v1486 = vsel %vm1485, %v1478, %v1482
    %v1487 = vand.u32 2147483647, %v1266
    %vm1488 = vcmp.eq.f32.partialorder %v1487, 8.507059e+37
    %v1489 = vand.u32 %v1266, 2147483648
    %v1490 = vor.u32 1.1754944e-38, %v1489
    %v1491 = vsel %vm1488, %v1490, %v1486
    %v1492 = vmul.f32 1.0, %v1491
    %v1493 = vrcp.pop %v1267
    %v1494 = vmul.f32 %v1267, %v1493
    %v1495 = vsub.f32 1.0, %v1494
    %v1496 = vmul.f32 %v1493, %v1495
    %v1497 = vadd.f32 %v1493, %v1496
    %vm1498 = vweird.f32 %v1267
    %vm1499 = vweird.f32 %v1493
    %vm1500 = vmor %vm1498, %vm1499
    %v1501 = vsel %vm1500, %v1493, %v1497
    %v1502 = vand.u32 2147483647, %v1267
    %vm1503 = vcmp.eq.f32.partialorder %v1502, 8.507059e+37
    %v1504 = vand.u32 %v1267, 2147483648
    %v1505 = vor.u32 1.1754944e-38, %v1504
    %v1506 = vsel %vm1503, %v1505, %v1501
    %v1507 = vmul.f32 1.0, %v1506
    %1508 = vst [vmem:[#allocation8] sm:$0xff] %v1282
    %1509 = vst [vmem:[#allocation8 + $0x8] sm:$0xff] %v1297
    %1510 = vst [vmem:[#allocation8 + $0x10] sm:$0xff] %v1312
    %1511 = vst [vmem:[#allocation8 + $0x18] sm:$0xff] %v1327
    %1512 = vst [vmem:[#allocation8 + $0x20] sm:$0xff] %v1342
    %1513 = vst [vmem:[#allocation8 + $0x28] sm:$0xff] %v1357
    %1514 = vst [vmem:[#allocation8 + $0x30] sm:$0xff] %v1372
    %1515 = vst [vmem:[#allocation8 + $0x38] sm:$0xff] %v1387
    %1516 = vst [vmem:[#allocation8 + $0x40] sm:$0xff] %v1402
    %1517 = vst [vmem:[#allocation8 + $0x48] sm:$0xff] %v1417
    %1518 = vst [vmem:[#allocation8 + $0x50] sm:$0xff] %v1432
    %1519 = vst [vmem:[#allocation8 + $0x58] sm:$0xff] %v1447
    %1520 = vst [vmem:[#allocation8 + $0x60] sm:$0xff] %v1462
    %1521 = vst [vmem:[#allocation8 + $0x68] sm:$0xff] %v1477
    %1522 = vst [vmem:[#allocation8 + $0x70] sm:$0xff] %v1492
    %1523 = vst [vmem:[#allocation8 + $0x78] sm:$0xff] %v1507
    // Predicated region
    $region26: #{tpu_custom_call.1} parent=1 // pred_check
      _
    $region27: #{tpu_custom_call.1} parent=1 // pred_check_branch
      %1525 = sbr.rel (0) target = $region29
    $region28: #{tpu_custom_call.1} parent=1 // pred_region
      %1527 = vsyncadd [#allocation4], 0
      %s1528 = sshll.u32 [#allocation8], 4
      %s1529 = int_to_ptr.vmem [resolvable:$true] %s1528
      %s1530 = sshll.u32 %s3, 4
      %s1531 = int_to_ptr.hbm [resolvable:$true] %s1530
      %1536 = dma.vmem_to_hbm [thread:$0]  %s1529, 2048, %s1531, [#allocation4], 128, 128, 8
    $region29: #{tpu_custom_call.1} parent=1 // pred_fallthru
      _
    // Predicated region
    $region30: #{tpu_custom_call.1} parent=1 // pred_check
      _
    $region31: #{tpu_custom_call.1} parent=1 // pred_check_branch
      %1538 = sbr.rel (0) target = $region33
    $region32: #{tpu_custom_call.1} parent=1 // pred_region
      %1540 = dma.done [#allocation4], 2048
    $region33: #{tpu_custom_call.1} parent=1 // pred_fallthru
      _
    %1541 = vsyncpa [#allocation3], 1
    %1542 = vsyncpa [#allocation6], 1
    %1543 = vsyncpa [#allocation4], 1

</llo_original>
